<compile_context>
chip_gen: v7x
topology: tpu7x:2x2x1
jax: 0.10.0
libtpu: 0.0.40
codegen_flags: <defaults>
</compile_context>

<pallas_src>
import jax
import jax.numpy as jnp
from jax.experimental import pallas as pl
from jax.experimental.pallas import tpu as pltpu

# ----------------------------- model dims (small) ---------------------------
B = 2          # batch
L = 8          # sequence length
D = 32         # d_model (hidden_dim)
NUM_HEADS = 2
HEAD_DIM = D // NUM_HEADS
DFF = 64       # feed-forward inner dim
VOCAB = 50
VOCAB_PAD = 64           # vocab rounded up for the one-hot gather matmul
NUM_LAYERS = 2
EPS = 1e-6
MM_DTYPE = jnp.bfloat16  # MXU operand dtype (weights cast wrapper-side)


def _rms_norm(x, w):
    # T5 LayerNorm: no mean subtraction, no bias. Elementwise math stays f32
    # (v5e VPU/EUP have no bf16 path; f32 is also exact at these sizes).
    var = jnp.mean(x * x, axis=-1, keepdims=True)
    return x * jax.lax.rsqrt(var + EPS) * w


# ------------------------------- fused kernel --------------------------------
def fused_encoder_kernel(ids_ref, mask_ref, emb_ref, ln1_ref, wqkv_ref, wo_ref,
                         ln2_ref, wi_ref, wo2_ref, lnf_ref, out_ref):
    """Embedding gather + whole T5-style encoder + final RMSNorm in one call.

    ids_ref:  (B*L, 1)  int32           token ids (column -> lane broadcast)
    mask_ref: (B, 1, L) f32             attention mask (1 = keep, 0 = pad)
    emb_ref:  (VOCAB_PAD, D) bf16       embedding table (zero-padded rows)
    ln*_ref:  (NUM_LAYERS, 1, D) f32    stacked RMSNorm weights
    wqkv_ref: (NUM_LAYERS, D, 3D) bf16  fused Q/K/V projection
    wo_ref:   (NUM_LAYERS, D, D) bf16   attention output projection
    wi_ref:   (NUM_LAYERS, D, DFF) bf16 / wo2_ref: (NUM_LAYERS, DFF, D) bf16
    lnf_ref:  (1, D) f32                final RMSNorm weight
    out_ref:  (B, L, D) f32             encoder_last_hidden_state
    """
    # ---- fused embedding gather: one-hot (B*L, VOCAB_PAD) @ table ----------
    ids = ids_ref[...]                                            # (B*L, 1) i32
    vocab_iota = jax.lax.broadcasted_iota(jnp.int32, (B * L, VOCAB_PAD), 1)
    onehot = (ids == vocab_iota).astype(MM_DTYPE)                 # (B*L, Vp)
    x = jnp.dot(onehot, emb_ref[...],
                preferred_element_type=jnp.float32)               # (B*L, D) f32

    # ---- additive key-mask bias, built in-kernel (0 -> -1e9) ---------------
    bias = (1.0 - mask_ref[...]) * -1e9                           # (B, 1, L) f32

    for li in range(NUM_LAYERS):                 # static unroll (2 layers)
        ln1_w = ln1_ref[li]                      # (1, D)
        ln2_w = ln2_ref[li]
        wqkv = wqkv_ref[li]                      # (D, 3D) bf16
        wo = wo_ref[li]                          # (D, D)  bf16
        wi = wi_ref[li]                          # (D, DFF) bf16
        wo2 = wo2_ref[li]                        # (DFF, D) bf16

        # ---------------- self attention ----------------
        h = _rms_norm(x, ln1_w)                                   # (B*L, D) f32
        # One fused lane-dense projection: (16, 32) @ (32, 96).
        qkv = jnp.dot(h.astype(MM_DTYPE), wqkv,
                      preferred_element_type=jnp.float32)         # (B*L, 3D)

        head_outs = []
        for hh in range(NUM_HEADS):              # static; lane slices only
            q = qkv[:, hh * HEAD_DIM:(hh + 1) * HEAD_DIM].reshape(B, L, HEAD_DIM)
            k = qkv[:, D + hh * HEAD_DIM:D + (hh + 1) * HEAD_DIM].reshape(B, L, HEAD_DIM)
            v = qkv[:, 2 * D + hh * HEAD_DIM:2 * D + (hh + 1) * HEAD_DIM].reshape(B, L, HEAD_DIM)
            # T5 does not scale attention logits by 1/sqrt(d_head).
            s = jnp.einsum('bqd,bkd->bqk', q, k,
                           preferred_element_type=jnp.float32) + bias  # (B, L, L)
            s = s - jnp.max(s, axis=-1, keepdims=True)
            p = jnp.exp(s)
            # approx=False: exact reciprocal (review parity concern); the
            # operand is a single (B, L, 1) slab so the Newton step is noise.
            p = p * pl.reciprocal(jnp.sum(p, axis=-1, keepdims=True),
                                  approx=False)
            o = jnp.einsum('bqk,bkd->bqd', p, v,
                           preferred_element_type=jnp.float32)    # (B, L, Hd)
            head_outs.append(o.reshape(B * L, HEAD_DIM))
        # 16-lane head concat (XLU), then ONE (D, D) output projection.
        merged = jnp.concatenate(head_outs, axis=-1)              # (B*L, D)
        x = x + jnp.dot(merged.astype(MM_DTYPE), wo,
                        preferred_element_type=jnp.float32)

        # ---------------- feed forward (ReLU, t5-small style) ----------------
        h2 = _rms_norm(x, ln2_w)
        ff = jnp.maximum(
            jnp.dot(h2.astype(MM_DTYPE), wi,
                    preferred_element_type=jnp.float32), 0.0)
        x = x + jnp.dot(ff.astype(MM_DTYPE), wo2,
                        preferred_element_type=jnp.float32)

    # ---------------- final RMSNorm + store ----------------
    y = _rms_norm(x, lnf_ref[...])                                # (B*L, D)
    # Natural (B, L, D) layout: total output is only 2 vregs at D=32, so a
    # lane-dense (B, L*D) relayout would cost more than it saves.
    out_ref[...] = y.reshape(B, L, D).astype(out_ref.dtype)


# ------------------------------ parameter prep --------------------------------
def _prep_params(params):
    """Stack per-layer weights in lane-dense, bf16 layouts.

    Q/K/V are concatenated into one (D, 3D) matrix per layer (no head split,
    no batch replication); all reshapes/concats run in XLA outside the kernel.
    """
    layers = params["layers"]

    def stack(name):
        return jnp.stack([lyr[name] for lyr in layers], axis=0)

    ln1 = stack("ln1")                                            # (NL, 1, D) f32
    ln2 = stack("ln2")                                            # (NL, 1, D) f32
    wqkv = jnp.concatenate([stack("wq"), stack("wk"), stack("wv")],
                           axis=-1).astype(MM_DTYPE)              # (NL, D, 3D)
    wo = stack("wo").astype(MM_DTYPE)                             # (NL, D, D)
    wi = stack("wi").astype(MM_DTYPE)                             # (NL, D, DFF)
    wo2 = stack("wo2").astype(MM_DTYPE)                           # (NL, DFF, D)
    return ln1, ln2, wqkv, wo, wi, wo2


# ------------------------------ cost estimate --------------------------------
def _padded_bytes(shape, dtype):
    """HBM<->VMEM bytes for a whole-array operand after TPU tile padding."""
    itemsize = jnp.dtype(dtype).itemsize
    sublane = 8 * (4 // itemsize)            # 8 for 4-byte, 16 for 2-byte dtypes
    dims = list(shape)
    dims[-1] = -(-dims[-1] // 128) * 128
    dims[-2] = -(-dims[-2] // sublane) * sublane
    n = 1
    for d in dims:
        n *= d
    return n * itemsize


def _cost_estimate():
    flops = 2 * (B * L) * VOCAB_PAD * D                    # one-hot embedding gather
    flops += NUM_LAYERS * (
        2 * (B * L) * D * (3 * D)                          # fused Q/K/V projection
        + NUM_HEADS * 2 * (2 * B * L * L * HEAD_DIM)       # scores + attn@v per head
        + 2 * (B * L) * D * D                              # output projection
        + 2 * 2 * (B * L) * D * DFF                        # FFN (two matmuls)
    )
    transcendentals = NUM_LAYERS * (NUM_HEADS * B * L * L  # exp
                                    + NUM_HEADS * B * L    # reciprocal
                                    + 2 * B * L) + B * L   # rsqrt
    bytes_accessed = sum([
        _padded_bytes((B * L, 1), jnp.int32),              # ids
        _padded_bytes((B, 1, L), jnp.float32),             # attention mask
        _padded_bytes((VOCAB_PAD, D), MM_DTYPE),           # embedding table
        2 * _padded_bytes((NUM_LAYERS, 1, D), jnp.float32),  # ln1, ln2
        _padded_bytes((NUM_LAYERS, D, 3 * D), MM_DTYPE),   # wqkv
        _padded_bytes((NUM_LAYERS, D, D), MM_DTYPE),       # wo
        _padded_bytes((NUM_LAYERS, D, DFF), MM_DTYPE),     # wi
        _padded_bytes((NUM_LAYERS, DFF, D), MM_DTYPE),     # wo2
        _padded_bytes((1, D), jnp.float32),                # ln_f
        _padded_bytes((B, L, D), jnp.float32),             # output
    ])
    return pl.CostEstimate(flops=flops, transcendentals=transcendentals,
                           bytes_accessed=bytes_accessed)


# ------------------------------ parameter init --------------------------------
def init_params(key):
    keys = jax.random.split(key, 2 + NUM_LAYERS)
    params = {
        "embedding": 0.02 * jax.random.normal(keys[0], (VOCAB, D), jnp.float32),
        "ln_f": jnp.ones((1, D), jnp.float32),
        "layers": [],
    }
    for li in range(NUM_LAYERS):
        lk = jax.random.split(keys[2 + li], 6)
        params["layers"].append({
            "ln1": jnp.ones((1, D), jnp.float32),
            "wq": 0.05 * jax.random.normal(lk[0], (D, D), jnp.float32),
            "wk": 0.05 * jax.random.normal(lk[1], (D, D), jnp.float32),
            "wv": 0.05 * jax.random.normal(lk[2], (D, D), jnp.float32),
            "wo": 0.05 * jax.random.normal(lk[3], (D, D), jnp.float32),
            "ln2": jnp.ones((1, D), jnp.float32),
            "wi": 0.05 * jax.random.normal(lk[4], (D, DFF), jnp.float32),
            "wo2": 0.05 * jax.random.normal(lk[5], (DFF, D), jnp.float32),
        })
    return params


# ------------------------------ forward (module) -----------------------------
@jax.jit
def language_tokenizer_forward(params, input_ids, attention_mask, pad_mask_lang):
    """Equivalent of LanguageTokenizer.forward for the t5 dict-input branch.

    Returns (tokens, pad_mask) == TokenGroup fields.
    """
    ln1, ln2, wqkv, wo, wi, wo2 = _prep_params(params)

    # Zero-pad the embedding table to a matmul-friendly vocab (rows >= VOCAB
    # are never selected by the in-kernel one-hot gather).
    emb = jnp.zeros((VOCAB_PAD, D), jnp.float32)
    emb = emb.at[:VOCAB].set(params["embedding"]).astype(MM_DTYPE)

    ids_col = input_ids.reshape(B * L, 1).astype(jnp.int32)        # (B*L, 1)
    mask_b = attention_mask.astype(jnp.float32).reshape(B, 1, L)   # (B, 1, L)

    tokens = pl.pallas_call(
        fused_encoder_kernel,
        out_shape=jax.ShapeDtypeStruct((B, L, D), jnp.float32),
        cost_estimate=_cost_estimate(),
        # No grid: the whole problem (~150 KB padded) is VMEM-resident on one
        # TensorCore. TODO(synk): add a parallel grid axis if B*L grows (v7x
        # second core currently idle by design at this size).
    )(ids_col, mask_b, emb, ln1, wqkv, wo, ln2, wi, wo2, params["ln_f"])

    # generate_proper_pad_mask: any() over the single key, broadcast to (B, L).
    # Pure broadcast -> done in the wrapper, not in the kernel.
    pad_mask = jnp.broadcast_to(pad_mask_lang[:, None], (B, L))
    return tokens, pad_mask


# ------------------------------------ main -----------------------------------
if __name__ == "__main__":
    key = jax.random.PRNGKey(0)
    pkey, ikey = jax.random.split(key)
    params = init_params(pkey)

    # Inputs: tasks['language_instruction'] = {'input_ids', 'attention_mask'},
    # tasks['pad_mask_dict']['language_instruction'] per-example bool.
    input_ids = jax.random.randint(ikey, (B, L), 0, VOCAB, dtype=jnp.int32)
    attention_mask = jnp.array(
        [[1] * L, [1] * 5 + [0] * (L - 5)], dtype=jnp.int32)        # (B, L)
    pad_mask_lang = jnp.array([True, True])                          # (B,)

    tokens, pad_mask = language_tokenizer_forward(
        params, input_ids, attention_mask, pad_mask_lang)
    tokens = jax.block_until_ready(tokens)
    pad_mask = jax.block_until_ready(pad_mask)

    # Sanity checks: shapes/dtypes and pad-mask semantics.
    assert tokens.shape == (B, L, D) and tokens.dtype == jnp.float32
    assert pad_mask.shape == (B, L) and pad_mask.dtype == jnp.bool_
    assert bool(jnp.all(jnp.isfinite(tokens)))
    expected_mask = jnp.broadcast_to(pad_mask_lang[:, None], (B, L))
    assert bool(jnp.all(pad_mask == expected_mask))

    print("KERNEL_OK")
</pallas_src>

<mosaic_0001>
module attributes {stable_mosaic.version = 11 : i64} {
  func.func @fused_encoder_kernel(%arg0: memref<16x1xi32, #tpu.memory_space<vmem>>, %arg1: memref<2x1x8xf32, #tpu.memory_space<vmem>>, %arg2: memref<64x32xbf16, #tpu.memory_space<vmem>>, %arg3: memref<2x1x32xf32, #tpu.memory_space<vmem>>, %arg4: memref<2x32x96xbf16, #tpu.memory_space<vmem>>, %arg5: memref<2x32x32xbf16, #tpu.memory_space<vmem>>, %arg6: memref<2x1x32xf32, #tpu.memory_space<vmem>>, %arg7: memref<2x32x64xbf16, #tpu.memory_space<vmem>>, %arg8: memref<2x64x32xbf16, #tpu.memory_space<vmem>>, %arg9: memref<1x32xf32, #tpu.memory_space<vmem>>, %arg10: memref<2x8x32xf32, #tpu.memory_space<vmem>>) attributes {dimension_semantics = [], scalar_prefetch = 0 : i64, scratch_operands = 0 : i64, tpu.core_type = #tpu.core_type<tc>} {
    %c0 = arith.constant 0 : index
    %c0_0 = arith.constant 0 : index
    %0 = vector.load %arg0[%c0, %c0_0] : memref<16x1xi32, #tpu.memory_space<vmem>>, vector<16x1xi32>
    %1 = tpu.iota {dimensions = array<i32: 1>} : vector<16x64xi32>
    %2 = vector.broadcast %0 : vector<16x1xi32> to vector<16x64xi32>
    %3 = arith.cmpi eq, %2, %1 : vector<16x64xi32>
    %4 = arith.extui %3 : vector<16x64xi1> to vector<16x64xi32>
    %5 = arith.sitofp %4 : vector<16x64xi32> to vector<16x64xf32>
    %6 = arith.truncf %5 : vector<16x64xf32> to vector<16x64xbf16>
    %c0_1 = arith.constant 0 : index
    %c0_2 = arith.constant 0 : index
    %7 = vector.load %arg2[%c0_1, %c0_2] : memref<64x32xbf16, #tpu.memory_space<vmem>>, vector<64x32xbf16>
    %cst = arith.constant dense<0.000000e+00> : vector<16x32xf32>
    %8 = tpu.matmul %6, %7, %cst {dimension_numbers = #tpu.dot_dimension_numbers<[1], [0], [0], [1], [0, 0, 1, 1], [], []>} : vector<16x64xbf16>, vector<64x32xbf16>, vector<16x32xf32> -> vector<16x32xf32>
    %c0_3 = arith.constant 0 : index
    %c0_4 = arith.constant 0 : index
    %c0_5 = arith.constant 0 : index
    %9 = vector.load %arg1[%c0_3, %c0_4, %c0_5] : memref<2x1x8xf32, #tpu.memory_space<vmem>>, vector<2x1x8xf32>
    %cst_6 = arith.constant 1.000000e+00 : f32
    %10 = vector.broadcast %cst_6 : f32 to vector<2x1x8xf32>
    %11 = arith.subf %10, %9 : vector<2x1x8xf32>
    %cst_7 = arith.constant -1.000000e+09 : f32
    %12 = vector.broadcast %cst_7 : f32 to vector<2x1x8xf32>
    %13 = arith.mulf %11, %12 : vector<2x1x8xf32>
    %c0_8 = arith.constant 0 : index
    %c0_9 = arith.constant 0 : index
    %c0_10 = arith.constant 0 : index
    %14 = vector.load %arg3[%c0_8, %c0_9, %c0_10] : memref<2x1x32xf32, #tpu.memory_space<vmem>>, vector<1x1x32xf32>
    %15 = vector.shape_cast %14 : vector<1x1x32xf32> to vector<1x32xf32>
    %c0_11 = arith.constant 0 : index
    %c0_12 = arith.constant 0 : index
    %c0_13 = arith.constant 0 : index
    %16 = vector.load %arg6[%c0_11, %c0_12, %c0_13] : memref<2x1x32xf32, #tpu.memory_space<vmem>>, vector<1x1x32xf32>
    %17 = vector.shape_cast %16 : vector<1x1x32xf32> to vector<1x32xf32>
    %c0_14 = arith.constant 0 : index
    %c0_15 = arith.constant 0 : index
    %c0_16 = arith.constant 0 : index
    %18 = vector.load %arg4[%c0_14, %c0_15, %c0_16] : memref<2x32x96xbf16, #tpu.memory_space<vmem>>, vector<1x32x96xbf16>
    %19 = vector.shape_cast %18 : vector<1x32x96xbf16> to vector<32x96xbf16>
    %c0_17 = arith.constant 0 : index
    %c0_18 = arith.constant 0 : index
    %c0_19 = arith.constant 0 : index
    %20 = vector.load %arg5[%c0_17, %c0_18, %c0_19] : memref<2x32x32xbf16, #tpu.memory_space<vmem>>, vector<1x32x32xbf16>
    %21 = vector.shape_cast %20 : vector<1x32x32xbf16> to vector<32x32xbf16>
    %c0_20 = arith.constant 0 : index
    %c0_21 = arith.constant 0 : index
    %c0_22 = arith.constant 0 : index
    %22 = vector.load %arg7[%c0_20, %c0_21, %c0_22] : memref<2x32x64xbf16, #tpu.memory_space<vmem>>, vector<1x32x64xbf16>
    %23 = vector.shape_cast %22 : vector<1x32x64xbf16> to vector<32x64xbf16>
    %c0_23 = arith.constant 0 : index
    %c0_24 = arith.constant 0 : index
    %c0_25 = arith.constant 0 : index
    %24 = vector.load %arg8[%c0_23, %c0_24, %c0_25] : memref<2x64x32xbf16, #tpu.memory_space<vmem>>, vector<1x64x32xbf16>
    %25 = vector.shape_cast %24 : vector<1x64x32xbf16> to vector<64x32xbf16>
    %26 = arith.mulf %8, %8 : vector<16x32xf32>
    %cst_26 = arith.constant dense<0.000000e+00> : vector<16xf32>
    %27 = vector.multi_reduction <add>, %26, %cst_26 [1] : vector<16x32xf32> to vector<16xf32>
    %28 = vector.shape_cast %27 : vector<16xf32> to vector<16x1xf32>
    %cst_27 = arith.constant 3.200000e+01 : f32
    %29 = vector.broadcast %cst_27 : f32 to vector<16x1xf32>
    %30 = arith.divf %28, %29 : vector<16x1xf32>
    %cst_28 = arith.constant 9.99999997E-7 : f32
    %31 = vector.broadcast %cst_28 : f32 to vector<16x1xf32>
    %32 = arith.addf %30, %31 : vector<16x1xf32>
    %33 = math.rsqrt %32 : vector<16x1xf32>
    %34 = vector.broadcast %33 : vector<16x1xf32> to vector<16x32xf32>
    %35 = arith.mulf %8, %34 : vector<16x32xf32>
    %36 = vector.broadcast %15 : vector<1x32xf32> to vector<16x32xf32>
    %37 = arith.mulf %35, %36 : vector<16x32xf32>
    %38 = arith.truncf %37 : vector<16x32xf32> to vector<16x32xbf16>
    %cst_29 = arith.constant dense<0.000000e+00> : vector<16x96xf32>
    %39 = tpu.matmul %38, %19, %cst_29 {dimension_numbers = #tpu.dot_dimension_numbers<[1], [0], [0], [1], [0, 0, 1, 1], [], []>} : vector<16x32xbf16>, vector<32x96xbf16>, vector<16x96xf32> -> vector<16x96xf32>
    %40 = vector.extract_strided_slice %39 {offsets = [0, 0], sizes = [16, 16], strides = [1, 1]} : vector<16x96xf32> to vector<16x16xf32>
    %41 = vector.shape_cast %40 : vector<16x16xf32> to vector<2x8x16xf32>
    %42 = vector.extract_strided_slice %39 {offsets = [0, 32], sizes = [16, 16], strides = [1, 1]} : vector<16x96xf32> to vector<16x16xf32>
    %43 = vector.shape_cast %42 : vector<16x16xf32> to vector<2x8x16xf32>
    %44 = vector.extract_strided_slice %39 {offsets = [0, 64], sizes = [16, 16], strides = [1, 1]} : vector<16x96xf32> to vector<16x16xf32>
    %45 = vector.shape_cast %44 : vector<16x16xf32> to vector<2x8x16xf32>
    "tpu.trace_start"() <{level = 10 : i32, message = "bqd,bkd->bqk"}> : () -> ()
    %cst_30 = arith.constant dense<0.000000e+00> : vector<2x8x8xf32>
    %46 = tpu.matmul %41, %43, %cst_30 {dimension_numbers = #tpu.dot_dimension_numbers<[2], [2], [1], [1], [0, 0, 0, 1, 1, 1], [0], [0]>} : vector<2x8x16xf32>, vector<2x8x16xf32>, vector<2x8x8xf32> -> vector<2x8x8xf32>
    "tpu.trace_stop"() : () -> ()
    %47 = vector.broadcast %13 : vector<2x1x8xf32> to vector<2x8x8xf32>
    %48 = arith.addf %46, %47 : vector<2x8x8xf32>
    %cst_31 = arith.constant dense<0xFF800000> : vector<2x8xf32>
    %49 = vector.multi_reduction <maximumf>, %48, %cst_31 [2] : vector<2x8x8xf32> to vector<2x8xf32>
    %50 = vector.shape_cast %49 : vector<2x8xf32> to vector<2x8x1xf32>
    %51 = vector.broadcast %50 : vector<2x8x1xf32> to vector<2x8x8xf32>
    %52 = arith.subf %48, %51 : vector<2x8x8xf32>
    %53 = math.exp %52 : vector<2x8x8xf32>
    %cst_32 = arith.constant dense<0.000000e+00> : vector<2x8xf32>
    %54 = vector.multi_reduction <add>, %53, %cst_32 [2] : vector<2x8x8xf32> to vector<2x8xf32>
    %55 = vector.shape_cast %54 : vector<2x8xf32> to vector<2x8x1xf32>
    %56 = tpu.reciprocal %55 : vector<2x8x1xf32> -> vector<2x8x1xf32>
    %57 = vector.broadcast %56 : vector<2x8x1xf32> to vector<2x8x8xf32>
    %58 = arith.mulf %53, %57 : vector<2x8x8xf32>
    "tpu.trace_start"() <{level = 10 : i32, message = "bqk,bkd->bqd"}> : () -> ()
    %cst_33 = arith.constant dense<0.000000e+00> : vector<2x8x16xf32>
    %59 = tpu.matmul %58, %45, %cst_33 {dimension_numbers = #tpu.dot_dimension_numbers<[2], [1], [1], [2], [0, 0, 0, 1, 1, 2], [0], [0]>} : vector<2x8x8xf32>, vector<2x8x16xf32>, vector<2x8x16xf32> -> vector<2x8x16xf32>
    "tpu.trace_stop"() : () -> ()
    %60 = vector.shape_cast %59 : vector<2x8x16xf32> to vector<16x16xf32>
    %61 = vector.extract_strided_slice %39 {offsets = [0, 16], sizes = [16, 16], strides = [1, 1]} : vector<16x96xf32> to vector<16x16xf32>
    %62 = vector.shape_cast %61 : vector<16x16xf32> to vector<2x8x16xf32>
    %63 = vector.extract_strided_slice %39 {offsets = [0, 48], sizes = [16, 16], strides = [1, 1]} : vector<16x96xf32> to vector<16x16xf32>
    %64 = vector.shape_cast %63 : vector<16x16xf32> to vector<2x8x16xf32>
    %65 = vector.extract_strided_slice %39 {offsets = [0, 80], sizes = [16, 16], strides = [1, 1]} : vector<16x96xf32> to vector<16x16xf32>
    %66 = vector.shape_cast %65 : vector<16x16xf32> to vector<2x8x16xf32>
    "tpu.trace_start"() <{level = 10 : i32, message = "bqd,bkd->bqk"}> : () -> ()
    %cst_34 = arith.constant dense<0.000000e+00> : vector<2x8x8xf32>
    %67 = tpu.matmul %62, %64, %cst_34 {dimension_numbers = #tpu.dot_dimension_numbers<[2], [2], [1], [1], [0, 0, 0, 1, 1, 1], [0], [0]>} : vector<2x8x16xf32>, vector<2x8x16xf32>, vector<2x8x8xf32> -> vector<2x8x8xf32>
    "tpu.trace_stop"() : () -> ()
    %68 = vector.broadcast %13 : vector<2x1x8xf32> to vector<2x8x8xf32>
    %69 = arith.addf %67, %68 : vector<2x8x8xf32>
    %cst_35 = arith.constant dense<0xFF800000> : vector<2x8xf32>
    %70 = vector.multi_reduction <maximumf>, %69, %cst_35 [2] : vector<2x8x8xf32> to vector<2x8xf32>
    %71 = vector.shape_cast %70 : vector<2x8xf32> to vector<2x8x1xf32>
    %72 = vector.broadcast %71 : vector<2x8x1xf32> to vector<2x8x8xf32>
    %73 = arith.subf %69, %72 : vector<2x8x8xf32>
    %74 = math.exp %73 : vector<2x8x8xf32>
    %cst_36 = arith.constant dense<0.000000e+00> : vector<2x8xf32>
    %75 = vector.multi_reduction <add>, %74, %cst_36 [2] : vector<2x8x8xf32> to vector<2x8xf32>
    %76 = vector.shape_cast %75 : vector<2x8xf32> to vector<2x8x1xf32>
    %77 = tpu.reciprocal %76 : vector<2x8x1xf32> -> vector<2x8x1xf32>
    %78 = vector.broadcast %77 : vector<2x8x1xf32> to vector<2x8x8xf32>
    %79 = arith.mulf %74, %78 : vector<2x8x8xf32>
    "tpu.trace_start"() <{level = 10 : i32, message = "bqk,bkd->bqd"}> : () -> ()
    %cst_37 = arith.constant dense<0.000000e+00> : vector<2x8x16xf32>
    %80 = tpu.matmul %79, %66, %cst_37 {dimension_numbers = #tpu.dot_dimension_numbers<[2], [1], [1], [2], [0, 0, 0, 1, 1, 2], [0], [0]>} : vector<2x8x8xf32>, vector<2x8x16xf32>, vector<2x8x16xf32> -> vector<2x8x16xf32>
    "tpu.trace_stop"() : () -> ()
    %81 = vector.shape_cast %80 : vector<2x8x16xf32> to vector<16x16xf32>
    %82 = tpu.concatenate %60, %81 in 1 : vector<16x16xf32>, vector<16x16xf32> -> vector<16x32xf32>
    %83 = arith.truncf %82 : vector<16x32xf32> to vector<16x32xbf16>
    %cst_38 = arith.constant dense<0.000000e+00> : vector<16x32xf32>
    %84 = tpu.matmul %83, %21, %cst_38 {dimension_numbers = #tpu.dot_dimension_numbers<[1], [0], [0], [1], [0, 0, 1, 1], [], []>} : vector<16x32xbf16>, vector<32x32xbf16>, vector<16x32xf32> -> vector<16x32xf32>
    %85 = arith.addf %8, %84 : vector<16x32xf32>
    %86 = arith.mulf %85, %85 : vector<16x32xf32>
    %cst_39 = arith.constant dense<0.000000e+00> : vector<16xf32>
    %87 = vector.multi_reduction <add>, %86, %cst_39 [1] : vector<16x32xf32> to vector<16xf32>
    %88 = vector.shape_cast %87 : vector<16xf32> to vector<16x1xf32>
    %cst_40 = arith.constant 3.200000e+01 : f32
    %89 = vector.broadcast %cst_40 : f32 to vector<16x1xf32>
    %90 = arith.divf %88, %89 : vector<16x1xf32>
    %cst_41 = arith.constant 9.99999997E-7 : f32
    %91 = vector.broadcast %cst_41 : f32 to vector<16x1xf32>
    %92 = arith.addf %90, %91 : vector<16x1xf32>
    %93 = math.rsqrt %92 : vector<16x1xf32>
    %94 = vector.broadcast %93 : vector<16x1xf32> to vector<16x32xf32>
    %95 = arith.mulf %85, %94 : vector<16x32xf32>
    %96 = vector.broadcast %17 : vector<1x32xf32> to vector<16x32xf32>
    %97 = arith.mulf %95, %96 : vector<16x32xf32>
    %98 = arith.truncf %97 : vector<16x32xf32> to vector<16x32xbf16>
    %cst_42 = arith.constant dense<0.000000e+00> : vector<16x64xf32>
    %99 = tpu.matmul %98, %23, %cst_42 {dimension_numbers = #tpu.dot_dimension_numbers<[1], [0], [0], [1], [0, 0, 1, 1], [], []>} : vector<16x32xbf16>, vector<32x64xbf16>, vector<16x64xf32> -> vector<16x64xf32>
    %cst_43 = arith.constant 0.000000e+00 : f32
    %100 = vector.broadcast %cst_43 : f32 to vector<16x64xf32>
    %101 = arith.maximumf %99, %100 : vector<16x64xf32>
    %102 = arith.truncf %101 : vector<16x64xf32> to vector<16x64xbf16>
    %cst_44 = arith.constant dense<0.000000e+00> : vector<16x32xf32>
    %103 = tpu.matmul %102, %25, %cst_44 {dimension_numbers = #tpu.dot_dimension_numbers<[1], [0], [0], [1], [0, 0, 1, 1], [], []>} : vector<16x64xbf16>, vector<64x32xbf16>, vector<16x32xf32> -> vector<16x32xf32>
    %104 = arith.addf %85, %103 : vector<16x32xf32>
    %c1 = arith.constant 1 : index
    %c0_45 = arith.constant 0 : index
    %c0_46 = arith.constant 0 : index
    %105 = vector.load %arg3[%c1, %c0_45, %c0_46] : memref<2x1x32xf32, #tpu.memory_space<vmem>>, vector<1x1x32xf32>
    %106 = vector.shape_cast %105 : vector<1x1x32xf32> to vector<1x32xf32>
    %c1_47 = arith.constant 1 : index
    %c0_48 = arith.constant 0 : index
    %c0_49 = arith.constant 0 : index
    %107 = vector.load %arg6[%c1_47, %c0_48, %c0_49] : memref<2x1x32xf32, #tpu.memory_space<vmem>>, vector<1x1x32xf32>
    %108 = vector.shape_cast %107 : vector<1x1x32xf32> to vector<1x32xf32>
    %c1_50 = arith.constant 1 : index
    %c0_51 = arith.constant 0 : index
    %c0_52 = arith.constant 0 : index
    %109 = vector.load %arg4[%c1_50, %c0_51, %c0_52] : memref<2x32x96xbf16, #tpu.memory_space<vmem>>, vector<1x32x96xbf16>
    %110 = vector.shape_cast %109 : vector<1x32x96xbf16> to vector<32x96xbf16>
    %c1_53 = arith.constant 1 : index
    %c0_54 = arith.constant 0 : index
    %c0_55 = arith.constant 0 : index
    %111 = vector.load %arg5[%c1_53, %c0_54, %c0_55] : memref<2x32x32xbf16, #tpu.memory_space<vmem>>, vector<1x32x32xbf16>
    %112 = vector.shape_cast %111 : vector<1x32x32xbf16> to vector<32x32xbf16>
    %c1_56 = arith.constant 1 : index
    %c0_57 = arith.constant 0 : index
    %c0_58 = arith.constant 0 : index
    %113 = vector.load %arg7[%c1_56, %c0_57, %c0_58] : memref<2x32x64xbf16, #tpu.memory_space<vmem>>, vector<1x32x64xbf16>
    %114 = vector.shape_cast %113 : vector<1x32x64xbf16> to vector<32x64xbf16>
    %c1_59 = arith.constant 1 : index
    %c0_60 = arith.constant 0 : index
    %c0_61 = arith.constant 0 : index
    %115 = vector.load %arg8[%c1_59, %c0_60, %c0_61] : memref<2x64x32xbf16, #tpu.memory_space<vmem>>, vector<1x64x32xbf16>
    %116 = vector.shape_cast %115 : vector<1x64x32xbf16> to vector<64x32xbf16>
    %117 = arith.mulf %104, %104 : vector<16x32xf32>
    %cst_62 = arith.constant dense<0.000000e+00> : vector<16xf32>
    %118 = vector.multi_reduction <add>, %117, %cst_62 [1] : vector<16x32xf32> to vector<16xf32>
    %119 = vector.shape_cast %118 : vector<16xf32> to vector<16x1xf32>
    %cst_63 = arith.constant 3.200000e+01 : f32
    %120 = vector.broadcast %cst_63 : f32 to vector<16x1xf32>
    %121 = arith.divf %119, %120 : vector<16x1xf32>
    %cst_64 = arith.constant 9.99999997E-7 : f32
    %122 = vector.broadcast %cst_64 : f32 to vector<16x1xf32>
    %123 = arith.addf %121, %122 : vector<16x1xf32>
    %124 = math.rsqrt %123 : vector<16x1xf32>
    %125 = vector.broadcast %124 : vector<16x1xf32> to vector<16x32xf32>
    %126 = arith.mulf %104, %125 : vector<16x32xf32>
    %127 = vector.broadcast %106 : vector<1x32xf32> to vector<16x32xf32>
    %128 = arith.mulf %126, %127 : vector<16x32xf32>
    %129 = arith.truncf %128 : vector<16x32xf32> to vector<16x32xbf16>
    %cst_65 = arith.constant dense<0.000000e+00> : vector<16x96xf32>
    %130 = tpu.matmul %129, %110, %cst_65 {dimension_numbers = #tpu.dot_dimension_numbers<[1], [0], [0], [1], [0, 0, 1, 1], [], []>} : vector<16x32xbf16>, vector<32x96xbf16>, vector<16x96xf32> -> vector<16x96xf32>
    %131 = vector.extract_strided_slice %130 {offsets = [0, 0], sizes = [16, 16], strides = [1, 1]} : vector<16x96xf32> to vector<16x16xf32>
    %132 = vector.shape_cast %131 : vector<16x16xf32> to vector<2x8x16xf32>
    %133 = vector.extract_strided_slice %130 {offsets = [0, 32], sizes = [16, 16], strides = [1, 1]} : vector<16x96xf32> to vector<16x16xf32>
    %134 = vector.shape_cast %133 : vector<16x16xf32> to vector<2x8x16xf32>
    %135 = vector.extract_strided_slice %130 {offsets = [0, 64], sizes = [16, 16], strides = [1, 1]} : vector<16x96xf32> to vector<16x16xf32>
    %136 = vector.shape_cast %135 : vector<16x16xf32> to vector<2x8x16xf32>
    "tpu.trace_start"() <{level = 10 : i32, message = "bqd,bkd->bqk"}> : () -> ()
    %cst_66 = arith.constant dense<0.000000e+00> : vector<2x8x8xf32>
    %137 = tpu.matmul %132, %134, %cst_66 {dimension_numbers = #tpu.dot_dimension_numbers<[2], [2], [1], [1], [0, 0, 0, 1, 1, 1], [0], [0]>} : vector<2x8x16xf32>, vector<2x8x16xf32>, vector<2x8x8xf32> -> vector<2x8x8xf32>
    "tpu.trace_stop"() : () -> ()
    %138 = vector.broadcast %13 : vector<2x1x8xf32> to vector<2x8x8xf32>
    %139 = arith.addf %137, %138 : vector<2x8x8xf32>
    %cst_67 = arith.constant dense<0xFF800000> : vector<2x8xf32>
    %140 = vector.multi_reduction <maximumf>, %139, %cst_67 [2] : vector<2x8x8xf32> to vector<2x8xf32>
    %141 = vector.shape_cast %140 : vector<2x8xf32> to vector<2x8x1xf32>
    %142 = vector.broadcast %141 : vector<2x8x1xf32> to vector<2x8x8xf32>
    %143 = arith.subf %139, %142 : vector<2x8x8xf32>
    %144 = math.exp %143 : vector<2x8x8xf32>
    %cst_68 = arith.constant dense<0.000000e+00> : vector<2x8xf32>
    %145 = vector.multi_reduction <add>, %144, %cst_68 [2] : vector<2x8x8xf32> to vector<2x8xf32>
    %146 = vector.shape_cast %145 : vector<2x8xf32> to vector<2x8x1xf32>
    %147 = tpu.reciprocal %146 : vector<2x8x1xf32> -> vector<2x8x1xf32>
    %148 = vector.broadcast %147 : vector<2x8x1xf32> to vector<2x8x8xf32>
    %149 = arith.mulf %144, %148 : vector<2x8x8xf32>
    "tpu.trace_start"() <{level = 10 : i32, message = "bqk,bkd->bqd"}> : () -> ()
    %cst_69 = arith.constant dense<0.000000e+00> : vector<2x8x16xf32>
    %150 = tpu.matmul %149, %136, %cst_69 {dimension_numbers = #tpu.dot_dimension_numbers<[2], [1], [1], [2], [0, 0, 0, 1, 1, 2], [0], [0]>} : vector<2x8x8xf32>, vector<2x8x16xf32>, vector<2x8x16xf32> -> vector<2x8x16xf32>
    "tpu.trace_stop"() : () -> ()
    %151 = vector.shape_cast %150 : vector<2x8x16xf32> to vector<16x16xf32>
    %152 = vector.extract_strided_slice %130 {offsets = [0, 16], sizes = [16, 16], strides = [1, 1]} : vector<16x96xf32> to vector<16x16xf32>
    %153 = vector.shape_cast %152 : vector<16x16xf32> to vector<2x8x16xf32>
    %154 = vector.extract_strided_slice %130 {offsets = [0, 48], sizes = [16, 16], strides = [1, 1]} : vector<16x96xf32> to vector<16x16xf32>
    %155 = vector.shape_cast %154 : vector<16x16xf32> to vector<2x8x16xf32>
    %156 = vector.extract_strided_slice %130 {offsets = [0, 80], sizes = [16, 16], strides = [1, 1]} : vector<16x96xf32> to vector<16x16xf32>
    %157 = vector.shape_cast %156 : vector<16x16xf32> to vector<2x8x16xf32>
    "tpu.trace_start"() <{level = 10 : i32, message = "bqd,bkd->bqk"}> : () -> ()
    %cst_70 = arith.constant dense<0.000000e+00> : vector<2x8x8xf32>
    %158 = tpu.matmul %153, %155, %cst_70 {dimension_numbers = #tpu.dot_dimension_numbers<[2], [2], [1], [1], [0, 0, 0, 1, 1, 1], [0], [0]>} : vector<2x8x16xf32>, vector<2x8x16xf32>, vector<2x8x8xf32> -> vector<2x8x8xf32>
    "tpu.trace_stop"() : () -> ()
    %159 = vector.broadcast %13 : vector<2x1x8xf32> to vector<2x8x8xf32>
    %160 = arith.addf %158, %159 : vector<2x8x8xf32>
    %cst_71 = arith.constant dense<0xFF800000> : vector<2x8xf32>
    %161 = vector.multi_reduction <maximumf>, %160, %cst_71 [2] : vector<2x8x8xf32> to vector<2x8xf32>
    %162 = vector.shape_cast %161 : vector<2x8xf32> to vector<2x8x1xf32>
    %163 = vector.broadcast %162 : vector<2x8x1xf32> to vector<2x8x8xf32>
    %164 = arith.subf %160, %163 : vector<2x8x8xf32>
    %165 = math.exp %164 : vector<2x8x8xf32>
    %cst_72 = arith.constant dense<0.000000e+00> : vector<2x8xf32>
    %166 = vector.multi_reduction <add>, %165, %cst_72 [2] : vector<2x8x8xf32> to vector<2x8xf32>
    %167 = vector.shape_cast %166 : vector<2x8xf32> to vector<2x8x1xf32>
    %168 = tpu.reciprocal %167 : vector<2x8x1xf32> -> vector<2x8x1xf32>
    %169 = vector.broadcast %168 : vector<2x8x1xf32> to vector<2x8x8xf32>
    %170 = arith.mulf %165, %169 : vector<2x8x8xf32>
    "tpu.trace_start"() <{level = 10 : i32, message = "bqk,bkd->bqd"}> : () -> ()
    %cst_73 = arith.constant dense<0.000000e+00> : vector<2x8x16xf32>
    %171 = tpu.matmul %170, %157, %cst_73 {dimension_numbers = #tpu.dot_dimension_numbers<[2], [1], [1], [2], [0, 0, 0, 1, 1, 2], [0], [0]>} : vector<2x8x8xf32>, vector<2x8x16xf32>, vector<2x8x16xf32> -> vector<2x8x16xf32>
    "tpu.trace_stop"() : () -> ()
    %172 = vector.shape_cast %171 : vector<2x8x16xf32> to vector<16x16xf32>
    %173 = tpu.concatenate %151, %172 in 1 : vector<16x16xf32>, vector<16x16xf32> -> vector<16x32xf32>
    %174 = arith.truncf %173 : vector<16x32xf32> to vector<16x32xbf16>
    %cst_74 = arith.constant dense<0.000000e+00> : vector<16x32xf32>
    %175 = tpu.matmul %174, %112, %cst_74 {dimension_numbers = #tpu.dot_dimension_numbers<[1], [0], [0], [1], [0, 0, 1, 1], [], []>} : vector<16x32xbf16>, vector<32x32xbf16>, vector<16x32xf32> -> vector<16x32xf32>
    %176 = arith.addf %104, %175 : vector<16x32xf32>
    %177 = arith.mulf %176, %176 : vector<16x32xf32>
    %cst_75 = arith.constant dense<0.000000e+00> : vector<16xf32>
    %178 = vector.multi_reduction <add>, %177, %cst_75 [1] : vector<16x32xf32> to vector<16xf32>
    %179 = vector.shape_cast %178 : vector<16xf32> to vector<16x1xf32>
    %cst_76 = arith.constant 3.200000e+01 : f32
    %180 = vector.broadcast %cst_76 : f32 to vector<16x1xf32>
    %181 = arith.divf %179, %180 : vector<16x1xf32>
    %cst_77 = arith.constant 9.99999997E-7 : f32
    %182 = vector.broadcast %cst_77 : f32 to vector<16x1xf32>
    %183 = arith.addf %181, %182 : vector<16x1xf32>
    %184 = math.rsqrt %183 : vector<16x1xf32>
    %185 = vector.broadcast %184 : vector<16x1xf32> to vector<16x32xf32>
    %186 = arith.mulf %176, %185 : vector<16x32xf32>
    %187 = vector.broadcast %108 : vector<1x32xf32> to vector<16x32xf32>
    %188 = arith.mulf %186, %187 : vector<16x32xf32>
    %189 = arith.truncf %188 : vector<16x32xf32> to vector<16x32xbf16>
    %cst_78 = arith.constant dense<0.000000e+00> : vector<16x64xf32>
    %190 = tpu.matmul %189, %114, %cst_78 {dimension_numbers = #tpu.dot_dimension_numbers<[1], [0], [0], [1], [0, 0, 1, 1], [], []>} : vector<16x32xbf16>, vector<32x64xbf16>, vector<16x64xf32> -> vector<16x64xf32>
    %cst_79 = arith.constant 0.000000e+00 : f32
    %191 = vector.broadcast %cst_79 : f32 to vector<16x64xf32>
    %192 = arith.maximumf %190, %191 : vector<16x64xf32>
    %193 = arith.truncf %192 : vector<16x64xf32> to vector<16x64xbf16>
    %cst_80 = arith.constant dense<0.000000e+00> : vector<16x32xf32>
    %194 = tpu.matmul %193, %116, %cst_80 {dimension_numbers = #tpu.dot_dimension_numbers<[1], [0], [0], [1], [0, 0, 1, 1], [], []>} : vector<16x64xbf16>, vector<64x32xbf16>, vector<16x32xf32> -> vector<16x32xf32>
    %195 = arith.addf %176, %194 : vector<16x32xf32>
    %c0_81 = arith.constant 0 : index
    %c0_82 = arith.constant 0 : index
    %196 = vector.load %arg9[%c0_81, %c0_82] : memref<1x32xf32, #tpu.memory_space<vmem>>, vector<1x32xf32>
    %197 = arith.mulf %195, %195 : vector<16x32xf32>
    %cst_83 = arith.constant dense<0.000000e+00> : vector<16xf32>
    %198 = vector.multi_reduction <add>, %197, %cst_83 [1] : vector<16x32xf32> to vector<16xf32>
    %199 = vector.shape_cast %198 : vector<16xf32> to vector<16x1xf32>
    %cst_84 = arith.constant 3.200000e+01 : f32
    %200 = vector.broadcast %cst_84 : f32 to vector<16x1xf32>
    %201 = arith.divf %199, %200 : vector<16x1xf32>
    %cst_85 = arith.constant 9.99999997E-7 : f32
    %202 = vector.broadcast %cst_85 : f32 to vector<16x1xf32>
    %203 = arith.addf %201, %202 : vector<16x1xf32>
    %204 = math.rsqrt %203 : vector<16x1xf32>
    %205 = vector.broadcast %204 : vector<16x1xf32> to vector<16x32xf32>
    %206 = arith.mulf %195, %205 : vector<16x32xf32>
    %207 = vector.broadcast %196 : vector<1x32xf32> to vector<16x32xf32>
    %208 = arith.mulf %206, %207 : vector<16x32xf32>
    %209 = vector.shape_cast %208 : vector<16x32xf32> to vector<2x8x32xf32>
    %c0_86 = arith.constant 0 : index
    %c0_87 = arith.constant 0 : index
    %c0_88 = arith.constant 0 : index
    %210 = vector.load %arg10[%c0_86, %c0_87, %c0_88] : memref<2x8x32xf32, #tpu.memory_space<vmem>>, vector<2x8x32xf32>
    tpu.vector_store %arg10[%c0_86, %c0_87, %c0_88], %209 {strides = array<i32>} : memref<2x8x32xf32, #tpu.memory_space<vmem>>, vector<2x8x32xf32>,
    return
  }
}

</mosaic_0001>

<llo_original>
// kernel: language_tokenizer_forward.1
$region0: #{language_tokenizer_forward.1}
  #allocation0 [shape = 'u32[]', space=smem, size = 0x4, offset = 0x4, fixed_abs, tag = 'smem constant byte address 0x4 - core index']
  #allocation1 [shape = 'u32[144,128]{1,0:T(1,128)}', space=vmem, size = 0x12000, scoped, tag = 'internal scratch']
  %s0 = inlined_call_operand.vmem [shape: s32[16,1], index: 0, kind: input, shape index: {}]
  %s1 = inlined_call_operand.vmem [shape: f32[2,1,8], index: 1, kind: input, shape index: {}]
  %s2 = inlined_call_operand.vmem [shape: bf16[64,32], index: 2, kind: input, shape index: {}]
  %s3 = inlined_call_operand.vmem [shape: f32[2,1,32], index: 3, kind: input, shape index: {}]
  %s4 = inlined_call_operand.vmem [shape: bf16[2,32,96], index: 4, kind: input, shape index: {}]
  %s5 = inlined_call_operand.vmem [shape: bf16[2,32,32], index: 5, kind: input, shape index: {}]
  %s6 = inlined_call_operand.vmem [shape: f32[2,1,32], index: 6, kind: input, shape index: {}]
  %s7 = inlined_call_operand.vmem [shape: bf16[2,32,64], index: 7, kind: input, shape index: {}]
  %s8 = inlined_call_operand.vmem [shape: bf16[2,64,32], index: 8, kind: input, shape index: {}]
  %s9 = inlined_call_operand.vmem [shape: f32[1,32], index: 9, kind: input, shape index: {}]
  %s10 = inlined_call_operand.hbm [shape: f32[2,8,32], index: 10, kind: output, shape index: {}]
  %s11 = sld [smem:[#allocation0]]
  $region50: #{language_tokenizer_forward.1} parent=0
    _
  %s13 = ssub.s32 1, %s11
  %s14 = scalar_select 0, %s13, %s11
  $region1: #{language_tokenizer_forward.1} parent=0
    #allocation2 [shape = 'u8[8192]{0}', space=vmem, size = 0x2000, scoped, tag = 'output window, operand 0, single buffered']
    #allocation3 [shape = 's32[1]{0}', space=sflag, size = 0x4, scoped, tag = 'scoped memory for language_tokenizer_forward.1']
    %15 = vsyncpa [#allocation3], 0
    // Predicated region
    $region2: #{language_tokenizer_forward.1} parent=1 // pred_check
      _
    $region3: #{language_tokenizer_forward.1} parent=1 // pred_check_branch
      %17 = sbr.rel (0) target = $region5
    $region4: #{language_tokenizer_forward.1} parent=1 // pred_region
      _
    $region5: #{language_tokenizer_forward.1} parent=1 // pred_fallthru
      _
    // Predicated region
    $region6: #{language_tokenizer_forward.1} parent=1 // pred_check
      _
    $region7: #{language_tokenizer_forward.1} parent=1 // pred_check_branch
      %19 = sbr.rel (0) target = $region9
    $region8: #{language_tokenizer_forward.1} parent=1 // pred_region
      _
    $region9: #{language_tokenizer_forward.1} parent=1 // pred_fallthru
      _
    // Predicated region
    $region10: #{language_tokenizer_forward.1} parent=1 // pred_check
      _
    $region11: #{language_tokenizer_forward.1} parent=1 // pred_check_branch
      %21 = sbr.rel (0) target = $region13
    $region12: #{language_tokenizer_forward.1} parent=1 // pred_region
      _
    $region13: #{language_tokenizer_forward.1} parent=1 // pred_fallthru
      _
    // Predicated region
    $region14: #{language_tokenizer_forward.1} parent=1 // pred_check
      _
    $region15: #{language_tokenizer_forward.1} parent=1 // pred_check_branch
      %23 = sbr.rel (0) target = $region17
    $region16: #{language_tokenizer_forward.1} parent=1 // pred_region
      _
    $region17: #{language_tokenizer_forward.1} parent=1 // pred_fallthru
      _
    // Predicated region
    $region18: #{language_tokenizer_forward.1} parent=1 // pred_check
      _
    $region19: #{language_tokenizer_forward.1} parent=1 // pred_check_branch
      %25 = sbr.rel (0) target = $region21
    $region20: #{language_tokenizer_forward.1} parent=1 // pred_region
      _
    $region21: #{language_tokenizer_forward.1} parent=1 // pred_fallthru
      _
    // Predicated region
    $region22: #{language_tokenizer_forward.1} parent=1 // pred_check
      _
    $region23: #{language_tokenizer_forward.1} parent=1 // pred_check_branch
      %27 = sbr.rel (0) target = $region25
    $region24: #{language_tokenizer_forward.1} parent=1 // pred_region
      _
    $region25: #{language_tokenizer_forward.1} parent=1 // pred_fallthru
      _
    // Predicated region
    $region26: #{language_tokenizer_forward.1} parent=1 // pred_check
      _
    $region27: #{language_tokenizer_forward.1} parent=1 // pred_check_branch
      %29 = sbr.rel (0) target = $region29
    $region28: #{language_tokenizer_forward.1} parent=1 // pred_region
      _
    $region29: #{language_tokenizer_forward.1} parent=1 // pred_fallthru
      _
    // Predicated region
    $region30: #{language_tokenizer_forward.1} parent=1 // pred_check
      _
    $region31: #{language_tokenizer_forward.1} parent=1 // pred_check_branch
      %31 = sbr.rel (0) target = $region33
    $region32: #{language_tokenizer_forward.1} parent=1 // pred_region
      _
    $region33: #{language_tokenizer_forward.1} parent=1 // pred_fallthru
      _
    // Predicated region
    $region34: #{language_tokenizer_forward.1} parent=1 // pred_check
      _
    $region35: #{language_tokenizer_forward.1} parent=1 // pred_check_branch
      %33 = sbr.rel (0) target = $region37
    $region36: #{language_tokenizer_forward.1} parent=1 // pred_region
      _
    $region37: #{language_tokenizer_forward.1} parent=1 // pred_fallthru
      _
    // Predicated region
    $region38: #{language_tokenizer_forward.1} parent=1 // pred_check
      _
    $region39: #{language_tokenizer_forward.1} parent=1 // pred_check_branch
      %35 = sbr.rel (0) target = $region41
    $region40: #{language_tokenizer_forward.1} parent=1 // pred_region
      _
    $region41: #{language_tokenizer_forward.1} parent=1 // pred_fallthru
      _
    %v37 = vld [vmem:[%s0] sm:$0xff]
    %v38 = vld [vmem:[%s0 + $0x8] sm:$0xff]
    %v39 = vlaneseq
    %v40 = vand.u32 %v39, 127
    %41 = vset.pattern.permute.xlu0 0
    %42 = vperm.xlu0 %41, %v37
    %v43 = vpop.permute.xlu0 %42
    %44 = vset.pattern.permute.xlu0 0
    %45 = vperm.xlu0 %44, %v38
    %v46 = vpop.permute.xlu0 %45
    %vm47 = vcmp.eq.s32.totalorder %v43, %v40
    %vm48 = vcmp.eq.s32.totalorder %v46, %v40
    %v49 = vsel %vm47, 1, 0
    %v50 = vsel %vm48, 1, 0
    %v51 = vcvt.s32.f32 %v49
    %v52 = vcvt.s32.f32 %v50
    %v53 = vpack.c.bf16 %v52, %v51
    %v54 = vld [vmem:[%s2] sm:$0xf]
    %v55 = vld [vmem:[%s2 + $0x4] sm:$0xf]
    %v56 = vld [vmem:[%s2 + $0x8] sm:$0xf]
    %v57 = vld [vmem:[%s2 + $0xc] sm:$0xf]
    %v58 = vld [vmem:[%s2 + $0x10] sm:$0xf]
    %v59 = vld [vmem:[%s2 + $0x14] sm:$0xf]
    %v60 = vld [vmem:[%s2 + $0x18] sm:$0xf]
    %v61 = vld [vmem:[%s2 + $0x1c] sm:$0xf]
    %v70 = vunpack.c.l.b16 %v54
    %v71 = vunpack.c.l.b16 %v55
    %v72 = vunpack.c.l.b16 %v56
    %v73 = vunpack.c.l.b16 %v57
    %v74 = vunpack.c.l.b16 %v58
    %v75 = vunpack.c.l.b16 %v59
    %v76 = vunpack.c.l.b16 %v60
    %v77 = vunpack.c.l.b16 %v61
    %v78 = vpack.c.b16 %v71, %v70
    %v79 = vpack.c.b16 %v73, %v72
    %v80 = vpack.c.b16 %v75, %v74
    %v81 = vpack.c.b16 %v77, %v76
    %vm86 = vcmask 523264
    %v88 = vsel %vm86, %v53, 0
    %90 = vmatprep.subr.bf16.mxu0 0
    %91 = vmatpush1.bf16.msra.mxu0 %v78
    %92 = vmatprep.subr.bf16.mxu0 0
    %93 = vmatpush1.bf16.msra.mxu0 %v79
    %94 = vmatprep.subr.bf16.mxu0 0
    %95 = vmatpush1.bf16.msra.mxu0 %v80
    %96 = vmatprep.subr.bf16.mxu0 0
    %97 = vmatpush1.bf16.msra.mxu0 %v81
    %98 = vmatprep.subr.bf16.mxu0 0
    %99 = vmatpush1.bf16.msra.mxu0 0
    %100 = vmatprep.subr.bf16.mxu0 0
    %101 = vmatpush1.bf16.msra.mxu0 0
    %102 = vmatprep.subr.bf16.mxu0 0
    %103 = vmatpush1.bf16.msra.mxu0 0
    %104 = vmatprep.subr.bf16.mxu0 0
    %105 = vmatpush1.bf16.msra.mxu0 0
    %106 = vmatprep.subr.bf16.mxu0 0
    %107 = vmatpush1.bf16.msra.mxu0 0
    %108 = vmatprep.subr.bf16.mxu0 0
    %109 = vmatpush1.bf16.msra.mxu0 0
    %110 = vmatprep.subr.bf16.mxu0 0
    %111 = vmatpush1.bf16.msra.mxu0 0
    %112 = vmatprep.subr.bf16.mxu0 0
    %113 = vmatpush1.bf16.msra.mxu0 0
    %114 = vmatprep.subr.bf16.mxu0 0
    %115 = vmatpush1.bf16.msra.mxu0 0
    %116 = vmatprep.subr.bf16.mxu0 0
    %117 = vmatpush1.bf16.msra.mxu0 0
    %118 = vmatprep.subr.bf16.mxu0 0
    %119 = vmatpush1.bf16.msra.mxu0 0
    %120 = vmatprep.subr.bf16.mxu0 0
    %121 = vmatpush1.bf16.msra.mxu0 0
    %122 = vmatprep.mubr.bf16.mxu0 0
    %123 = vmatmul.mubr.bf16.gmra.mrb[0].mxu0 %v88
    %v124 = vpop.f32.mrb[0].mxu0
    %v125 = vadd.f32 0.0, %v124
    %v126 = vpop.f32.mrb[0].mxu0
    %v127 = vpop.f32.mrb[0].mxu0
    %v128 = vadd.f32 0.0, %v127
    %v129 = vpop.f32.mrb[0].mxu0
    %130 = vdwg.mxu0
    %v131 = vld [vmem:[%s1] sm:$0x1]
    %v132 = vld [vmem:[%s1 + $0x1] sm:$0x1]
    %v133 = vsub.f32 1.0, %v131
    %v134 = vsub.f32 1.0, %v132
    %v135 = vmul.f32 %v133, -1e+09
    %v136 = vmul.f32 %v134, -1e+09
    %v137 = vld [vmem:[%s3] sm:$0x1]
    %v138 = vld [vmem:[%s6] sm:$0x1]
    %v139 = vld [vmem:[%s4] sm:$0xf]
    %v140 = vld [vmem:[%s4 + $0x4] sm:$0xf]
    %v141 = vld [vmem:[%s4 + $0x8] sm:$0xf]
    %v142 = vld [vmem:[%s4 + $0xc] sm:$0xf]
    %v143 = vld [vmem:[%s5] sm:$0xf]
    %v144 = vld [vmem:[%s5 + $0x4] sm:$0xf]
    %v145 = vld [vmem:[%s5 + $0x8] sm:$0xf]
    %v146 = vld [vmem:[%s5 + $0xc] sm:$0xf]
    %v147 = vld [vmem:[%s7] sm:$0xf]
    %v148 = vld [vmem:[%s7 + $0x4] sm:$0xf]
    %v149 = vld [vmem:[%s7 + $0x8] sm:$0xf]
    %v150 = vld [vmem:[%s7 + $0xc] sm:$0xf]
    %v151 = vld [vmem:[%s8] sm:$0xf]
    %v152 = vld [vmem:[%s8 + $0x4] sm:$0xf]
    %v153 = vld [vmem:[%s8 + $0x8] sm:$0xf]
    %v154 = vld [vmem:[%s8 + $0xc] sm:$0xf]
    %v155 = vld [vmem:[%s8 + $0x10] sm:$0xf]
    %v156 = vld [vmem:[%s8 + $0x14] sm:$0xf]
    %v157 = vld [vmem:[%s8 + $0x18] sm:$0xf]
    %v158 = vld [vmem:[%s8 + $0x1c] sm:$0xf]
    %v159 = vmul.f32 %v125, %v125
    %v160 = vmul.f32 %v128, %v128
    %vm161 = vcmask 261120
    %v162 = vsel %vm161, %v159, 0.0
    %163 = vadd.xlane.f32.xlu0 %v162
    %v164 = vpop.xlane.xlu0 %163
    %v165 = vsel %vm161, %v160, 0.0
    %166 = vadd.xlane.f32.xlu0 %v165
    %v167 = vpop.xlane.xlu0 %166
    %v168 = vrcp.pop 32.0
    %v169 = vmul.f32 %v164, %v168
    %v170 = vmul.f32 %v167, %v168
    %v171 = vadd.f32 %v169, 1e-06
    %v172 = vadd.f32 %v170, 1e-06
    %v173 = vrsqrt.pop %v171
    %v174 = vrsqrt.pop %v172
    %v175 = vmul.f32 %v125, %v173
    %v176 = vmul.f32 %v128, %v174
    %v178 = vlaneseq
    %v179 = vshrl.u32 %v178, 7
    %v180 = vsub.s32 0, %v179
    %v181 = vrot.slane %v137, %v180
    %v183 = vmul.f32 %v175, %v181
    %v184 = vmul.f32 %v176, %v181
    %v185 = vpack.c.bf16 %v184, %v183
    %v190 = vunpack.c.l.b16 %v139
    %v191 = vunpack.c.l.b16 %v140
    %v192 = vunpack.c.l.b16 %v141
    %v193 = vunpack.c.l.b16 %v142
    %v194 = vpack.c.b16 %v191, %v190
    %v195 = vpack.c.b16 %v193, %v192
    %v199 = vsel %vm161, %v185, 0
    %201 = vmatprep.subr.bf16.mxu0 0
    %202 = vmatpush1.bf16.msra.mxu0 %v194
    %203 = vmatprep.subr.bf16.mxu0 0
    %204 = vmatpush1.bf16.msra.mxu0 %v195
    %205 = vmatprep.subr.bf16.mxu0 0
    %206 = vmatpush1.bf16.msra.mxu0 0
    %207 = vmatprep.subr.bf16.mxu0 0
    %208 = vmatpush1.bf16.msra.mxu0 0
    %209 = vmatprep.subr.bf16.mxu0 0
    %210 = vmatpush1.bf16.msra.mxu0 0
    %211 = vmatprep.subr.bf16.mxu0 0
    %212 = vmatpush1.bf16.msra.mxu0 0
    %213 = vmatprep.subr.bf16.mxu0 0
    %214 = vmatpush1.bf16.msra.mxu0 0
    %215 = vmatprep.subr.bf16.mxu0 0
    %216 = vmatpush1.bf16.msra.mxu0 0
    %217 = vmatprep.subr.bf16.mxu0 0
    %218 = vmatpush1.bf16.msra.mxu0 0
    %219 = vmatprep.subr.bf16.mxu0 0
    %220 = vmatpush1.bf16.msra.mxu0 0
    %221 = vmatprep.subr.bf16.mxu0 0
    %222 = vmatpush1.bf16.msra.mxu0 0
    %223 = vmatprep.subr.bf16.mxu0 0
    %224 = vmatpush1.bf16.msra.mxu0 0
    %225 = vmatprep.subr.bf16.mxu0 0
    %226 = vmatpush1.bf16.msra.mxu0 0
    %227 = vmatprep.subr.bf16.mxu0 0
    %228 = vmatpush1.bf16.msra.mxu0 0
    %229 = vmatprep.subr.bf16.mxu0 0
    %230 = vmatpush1.bf16.msra.mxu0 0
    %231 = vmatprep.subr.bf16.mxu0 0
    %232 = vmatpush1.bf16.msra.mxu0 0
    %233 = vmatprep.mubr.bf16.mxu0 0
    %234 = vmatmul.mubr.bf16.gmra.mrb[0].mxu0 %v199
    %v235 = vpop.f32.mrb[0].mxu0
    %v236 = vadd.f32 0.0, %v235
    %v237 = vpop.f32.mrb[0].mxu0
    %v238 = vpop.f32.mrb[0].mxu0
    %v239 = vadd.f32 0.0, %v238
    %v240 = vpop.f32.mrb[0].mxu0
    %241 = vdwg.mxu0
    %v244 = vlaneseq
    %v245 = vshrl.u32 %v244, 7
    %v246 = vsub.s32 0, %v245
    %v247 = vrot.slane %v135, %v246
    %v248 = vlaneseq
    %v249 = vshrl.u32 %v248, 7
    %v250 = vsub.s32 0, %v249
    %v251 = vrot.slane %v136, %v250
    %255 = vrot.lane.b32.xlu0 %v236, 96
    %v256 = vpop.permute.xlu0 %255
    %vm257 = vcmask 130048
    %v258 = vsel %vm257, %v236, 0
    %v260 = vsel %vm257, %v256, 0
    %262 = vmatprep.subr.mxu0 0.0
    %263 = vmatpush1.xpose.msra.mxu0 %v260
    %264 = vmatprep.subr.mxu0 0.0
    %265 = vmatpush1.xpose.msra.mxu0 0.0
    %266 = vmatprep.subr.mxu0 0.0
    %267 = vmatpush1.xpose.msra.mxu0 0.0
    %268 = vmatprep.subr.mxu0 0.0
    %269 = vmatpush1.xpose.msra.mxu0 0.0
    %270 = vmatprep.subr.mxu0 0.0
    %271 = vmatpush1.xpose.msra.mxu0 0.0
    %272 = vmatprep.subr.mxu0 0.0
    %273 = vmatpush1.xpose.msra.mxu0 0.0
    %274 = vmatprep.subr.mxu0 0.0
    %275 = vmatpush1.xpose.msra.mxu0 0.0
    %276 = vmatprep.subr.mxu0 0.0
    %277 = vmatpush1.xpose.msra.mxu0 0.0
    %278 = vmatprep.subr.mxu0 0.0
    %279 = vmatpush1.xpose.msra.mxu0 0.0
    %280 = vmatprep.subr.mxu0 0.0
    %281 = vmatpush1.xpose.msra.mxu0 0.0
    %282 = vmatprep.subr.mxu0 0.0
    %283 = vmatpush1.xpose.msra.mxu0 0.0
    %284 = vmatprep.subr.mxu0 0.0
    %285 = vmatpush1.xpose.msra.mxu0 0.0
    %286 = vmatprep.subr.mxu0 0.0
    %287 = vmatpush1.xpose.msra.mxu0 0.0
    %288 = vmatprep.subr.mxu0 0.0
    %289 = vmatpush1.xpose.msra.mxu0 0.0
    %290 = vmatprep.subr.mxu0 0.0
    %291 = vmatpush1.xpose.msra.mxu0 0.0
    %292 = vmatprep.subr.mxu0 0.0
    %293 = vmatpush1.xpose.msra.mxu0 0.0
    %294 = vmatprep.subr.mxu0 0.0
    %295 = vmatpush1.xpose.msra.mxu0 0.0
    %296 = vmatprep.subr.mxu0 0.0
    %297 = vmatpush1.xpose.msra.mxu0 0.0
    %298 = vmatprep.subr.mxu0 0.0
    %299 = vmatpush1.xpose.msra.mxu0 0.0
    %300 = vmatprep.subr.mxu0 0.0
    %301 = vmatpush1.xpose.msra.mxu0 0.0
    %302 = vmatprep.subr.mxu0 0.0
    %303 = vmatpush1.xpose.msra.mxu0 0.0
    %304 = vmatprep.subr.mxu0 0.0
    %305 = vmatpush1.xpose.msra.mxu0 0.0
    %306 = vmatprep.subr.mxu0 0.0
    %307 = vmatpush1.xpose.msra.mxu0 0.0
    %308 = vmatprep.subr.mxu0 0.0
    %309 = vmatpush1.xpose.msra.mxu0 0.0
    %310 = vmatprep.subr.mxu0 0.0
    %311 = vmatpush1.xpose.msra.mxu0 0.0
    %312 = vmatprep.subr.mxu0 0.0
    %313 = vmatpush1.xpose.msra.mxu0 0.0
    %314 = vmatprep.subr.mxu0 0.0
    %315 = vmatpush1.xpose.msra.mxu0 0.0
    %316 = vmatprep.subr.mxu0 0.0
    %317 = vmatpush1.xpose.msra.mxu0 0.0
    %318 = vmatprep.subr.mxu0 0.0
    %319 = vmatpush1.xpose.msra.mxu0 0.0
    %320 = vmatprep.subr.mxu0 0.0
    %321 = vmatpush1.xpose.msra.mxu0 0.0
    %322 = vmatprep.subr.mxu0 0.0
    %323 = vmatpush1.xpose.msra.mxu0 0.0
    %324 = vmatprep.subr.mxu0 0.0
    %325 = vmatpush1.xpose.msra.mxu0 0.0
    %326 = vmatprep.mubr.f32.mxu0 0.0
    %327 = vmatmul.mubr.f32.gmra.mrb[0].mxu0 %v258
    %v328 = vpop.f32.mrb[0].mxu0
    %v329 = vadd.f32 %v247, %v328
    %v330 = vpop.f32.mrb[0].mxu0
    %331 = vdwg.mxu0
    %333 = vrot.lane.b32.xlu0 %v239, 96
    %v334 = vpop.permute.xlu0 %333
    %v335 = vsel %vm257, %v239, 0
    %v337 = vsel %vm257, %v334, 0
    %339 = vmatprep.subr.mxu0 0.0
    %340 = vmatpush1.xpose.msra.mxu0 %v337
    %341 = vmatprep.subr.mxu0 0.0
    %342 = vmatpush1.xpose.msra.mxu0 0.0
    %343 = vmatprep.subr.mxu0 0.0
    %344 = vmatpush1.xpose.msra.mxu0 0.0
    %345 = vmatprep.subr.mxu0 0.0
    %346 = vmatpush1.xpose.msra.mxu0 0.0
    %347 = vmatprep.subr.mxu0 0.0
    %348 = vmatpush1.xpose.msra.mxu0 0.0
    %349 = vmatprep.subr.mxu0 0.0
    %350 = vmatpush1.xpose.msra.mxu0 0.0
    %351 = vmatprep.subr.mxu0 0.0
    %352 = vmatpush1.xpose.msra.mxu0 0.0
    %353 = vmatprep.subr.mxu0 0.0
    %354 = vmatpush1.xpose.msra.mxu0 0.0
    %355 = vmatprep.subr.mxu0 0.0
    %356 = vmatpush1.xpose.msra.mxu0 0.0
    %357 = vmatprep.subr.mxu0 0.0
    %358 = vmatpush1.xpose.msra.mxu0 0.0
    %359 = vmatprep.subr.mxu0 0.0
    %360 = vmatpush1.xpose.msra.mxu0 0.0
    %361 = vmatprep.subr.mxu0 0.0
    %362 = vmatpush1.xpose.msra.mxu0 0.0
    %363 = vmatprep.subr.mxu0 0.0
    %364 = vmatpush1.xpose.msra.mxu0 0.0
    %365 = vmatprep.subr.mxu0 0.0
    %366 = vmatpush1.xpose.msra.mxu0 0.0
    %367 = vmatprep.subr.mxu0 0.0
    %368 = vmatpush1.xpose.msra.mxu0 0.0
    %369 = vmatprep.subr.mxu0 0.0
    %370 = vmatpush1.xpose.msra.mxu0 0.0
    %371 = vmatprep.subr.mxu0 0.0
    %372 = vmatpush1.xpose.msra.mxu0 0.0
    %373 = vmatprep.subr.mxu0 0.0
    %374 = vmatpush1.xpose.msra.mxu0 0.0
    %375 = vmatprep.subr.mxu0 0.0
    %376 = vmatpush1.xpose.msra.mxu0 0.0
    %377 = vmatprep.subr.mxu0 0.0
    %378 = vmatpush1.xpose.msra.mxu0 0.0
    %379 = vmatprep.subr.mxu0 0.0
    %380 = vmatpush1.xpose.msra.mxu0 0.0
    %381 = vmatprep.subr.mxu0 0.0
    %382 = vmatpush1.xpose.msra.mxu0 0.0
    %383 = vmatprep.subr.mxu0 0.0
    %384 = vmatpush1.xpose.msra.mxu0 0.0
    %385 = vmatprep.subr.mxu0 0.0
    %386 = vmatpush1.xpose.msra.mxu0 0.0
    %387 = vmatprep.subr.mxu0 0.0
    %388 = vmatpush1.xpose.msra.mxu0 0.0
    %389 = vmatprep.subr.mxu0 0.0
    %390 = vmatpush1.xpose.msra.mxu0 0.0
    %391 = vmatprep.subr.mxu0 0.0
    %392 = vmatpush1.xpose.msra.mxu0 0.0
    %393 = vmatprep.subr.mxu0 0.0
    %394 = vmatpush1.xpose.msra.mxu0 0.0
    %395 = vmatprep.subr.mxu0 0.0
    %396 = vmatpush1.xpose.msra.mxu0 0.0
    %397 = vmatprep.subr.mxu0 0.0
    %398 = vmatpush1.xpose.msra.mxu0 0.0
    %399 = vmatprep.subr.mxu0 0.0
    %400 = vmatpush1.xpose.msra.mxu0 0.0
    %401 = vmatprep.subr.mxu0 0.0
    %402 = vmatpush1.xpose.msra.mxu0 0.0
    %403 = vmatprep.mubr.f32.mxu0 0.0
    %404 = vmatmul.mubr.f32.gmra.mrb[0].mxu0 %v335
    %v405 = vpop.f32.mrb[0].mxu0
    %v406 = vadd.f32 %v251, %v405
    %v407 = vpop.f32.mrb[0].mxu0
    %408 = vdwg.mxu0
    %vm409 = vcmask 64512
    %v410 = vsel %vm409, %v329, -inf
    %411 = vmax.xlane.f32.xlu0 %v410
    %v412 = vpop.xlane.xlu0 %411
    %v413 = vsel %vm409, %v406, -inf
    %414 = vmax.xlane.f32.xlu0 %v413
    %v415 = vpop.xlane.xlu0 %414
    %v416 = vsub.f32 %v329, %v412
    %v417 = vsub.f32 %v406, %v415
    %v418 = vmul.f32 %v416, 1.442695
    %v419 = vpow.pop %v418
    %v420 = vmul.f32 %v417, 1.442695
    %v421 = vpow.pop %v420
    %v422 = vsel %vm409, %v419, 0.0
    %423 = vadd.xlane.f32.xlu0 %v422
    %v424 = vpop.xlane.xlu0 %423
    %v425 = vsel %vm409, %v421, 0.0
    %426 = vadd.xlane.f32.xlu0 %v425
    %v427 = vpop.xlane.xlu0 %426
    %v428 = vrcp.pop %v424
    %v429 = vrcp.pop %v427
    %v430 = vmul.f32 %v419, %v428
    %v431 = vmul.f32 %v421, %v429
    %432 = vrot.lane.b32.xlu0 %v236, 64
    %v433 = vpop.permute.xlu0 %432
    %v436 = vsel %vm409, %v430, 0
    %438 = vmatprep.subr.mxu0 0.0
    %439 = vmatpush1.msra.mxu0 %v433
    %440 = vmatprep.subr.mxu0 0.0
    %441 = vmatpush1.msra.mxu0 0.0
    %442 = vmatprep.subr.mxu0 0.0
    %443 = vmatpush1.msra.mxu0 0.0
    %444 = vmatprep.subr.mxu0 0.0
    %445 = vmatpush1.msra.mxu0 0.0
    %446 = vmatprep.subr.mxu0 0.0
    %447 = vmatpush1.msra.mxu0 0.0
    %448 = vmatprep.subr.mxu0 0.0
    %449 = vmatpush1.msra.mxu0 0.0
    %450 = vmatprep.subr.mxu0 0.0
    %451 = vmatpush1.msra.mxu0 0.0
    %452 = vmatprep.subr.mxu0 0.0
    %453 = vmatpush1.msra.mxu0 0.0
    %454 = vmatprep.subr.mxu0 0.0
    %455 = vmatpush1.msra.mxu0 0.0
    %456 = vmatprep.subr.mxu0 0.0
    %457 = vmatpush1.msra.mxu0 0.0
    %458 = vmatprep.subr.mxu0 0.0
    %459 = vmatpush1.msra.mxu0 0.0
    %460 = vmatprep.subr.mxu0 0.0
    %461 = vmatpush1.msra.mxu0 0.0
    %462 = vmatprep.subr.mxu0 0.0
    %463 = vmatpush1.msra.mxu0 0.0
    %464 = vmatprep.subr.mxu0 0.0
    %465 = vmatpush1.msra.mxu0 0.0
    %466 = vmatprep.subr.mxu0 0.0
    %467 = vmatpush1.msra.mxu0 0.0
    %468 = vmatprep.subr.mxu0 0.0
    %469 = vmatpush1.msra.mxu0 0.0
    %470 = vmatprep.subr.mxu0 0.0
    %471 = vmatpush1.msra.mxu0 0.0
    %472 = vmatprep.subr.mxu0 0.0
    %473 = vmatpush1.msra.mxu0 0.0
    %474 = vmatprep.subr.mxu0 0.0
    %475 = vmatpush1.msra.mxu0 0.0
    %476 = vmatprep.subr.mxu0 0.0
    %477 = vmatpush1.msra.mxu0 0.0
    %478 = vmatprep.subr.mxu0 0.0
    %479 = vmatpush1.msra.mxu0 0.0
    %480 = vmatprep.subr.mxu0 0.0
    %481 = vmatpush1.msra.mxu0 0.0
    %482 = vmatprep.subr.mxu0 0.0
    %483 = vmatpush1.msra.mxu0 0.0
    %484 = vmatprep.subr.mxu0 0.0
    %485 = vmatpush1.msra.mxu0 0.0
    %486 = vmatprep.subr.mxu0 0.0
    %487 = vmatpush1.msra.mxu0 0.0
    %488 = vmatprep.subr.mxu0 0.0
    %489 = vmatpush1.msra.mxu0 0.0
    %490 = vmatprep.subr.mxu0 0.0
    %491 = vmatpush1.msra.mxu0 0.0
    %492 = vmatprep.subr.mxu0 0.0
    %493 = vmatpush1.msra.mxu0 0.0
    %494 = vmatprep.subr.mxu0 0.0
    %495 = vmatpush1.msra.mxu0 0.0
    %496 = vmatprep.subr.mxu0 0.0
    %497 = vmatpush1.msra.mxu0 0.0
    %498 = vmatprep.subr.mxu0 0.0
    %499 = vmatpush1.msra.mxu0 0.0
    %500 = vmatprep.subr.mxu0 0.0
    %501 = vmatpush1.msra.mxu0 0.0
    %502 = vmatprep.mubr.f32.mxu0 0.0
    %503 = vmatmul.mubr.f32.gmra.mrb[0].mxu0 %v436
    %v504 = vpop.f32.mrb[0].mxu0
    %v505 = vadd.f32 0.0, %v504
    %v506 = vpop.f32.mrb[0].mxu0
    %507 = vdwg.mxu0
    %508 = vrot.lane.b32.xlu0 %v239, 64
    %v509 = vpop.permute.xlu0 %508
    %v512 = vsel %vm409, %v431, 0
    %514 = vmatprep.subr.mxu0 0.0
    %515 = vmatpush1.msra.mxu0 %v509
    %516 = vmatprep.subr.mxu0 0.0
    %517 = vmatpush1.msra.mxu0 0.0
    %518 = vmatprep.subr.mxu0 0.0
    %519 = vmatpush1.msra.mxu0 0.0
    %520 = vmatprep.subr.mxu0 0.0
    %521 = vmatpush1.msra.mxu0 0.0
    %522 = vmatprep.subr.mxu0 0.0
    %523 = vmatpush1.msra.mxu0 0.0
    %524 = vmatprep.subr.mxu0 0.0
    %525 = vmatpush1.msra.mxu0 0.0
    %526 = vmatprep.subr.mxu0 0.0
    %527 = vmatpush1.msra.mxu0 0.0
    %528 = vmatprep.subr.mxu0 0.0
    %529 = vmatpush1.msra.mxu0 0.0
    %530 = vmatprep.subr.mxu0 0.0
    %531 = vmatpush1.msra.mxu0 0.0
    %532 = vmatprep.subr.mxu0 0.0
    %533 = vmatpush1.msra.mxu0 0.0
    %534 = vmatprep.subr.mxu0 0.0
    %535 = vmatpush1.msra.mxu0 0.0
    %536 = vmatprep.subr.mxu0 0.0
    %537 = vmatpush1.msra.mxu0 0.0
    %538 = vmatprep.subr.mxu0 0.0
    %539 = vmatpush1.msra.mxu0 0.0
    %540 = vmatprep.subr.mxu0 0.0
    %541 = vmatpush1.msra.mxu0 0.0
    %542 = vmatprep.subr.mxu0 0.0
    %543 = vmatpush1.msra.mxu0 0.0
    %544 = vmatprep.subr.mxu0 0.0
    %545 = vmatpush1.msra.mxu0 0.0
    %546 = vmatprep.subr.mxu0 0.0
    %547 = vmatpush1.msra.mxu0 0.0
    %548 = vmatprep.subr.mxu0 0.0
    %549 = vmatpush1.msra.mxu0 0.0
    %550 = vmatprep.subr.mxu0 0.0
    %551 = vmatpush1.msra.mxu0 0.0
    %552 = vmatprep.subr.mxu0 0.0
    %553 = vmatpush1.msra.mxu0 0.0
    %554 = vmatprep.subr.mxu0 0.0
    %555 = vmatpush1.msra.mxu0 0.0
    %556 = vmatprep.subr.mxu0 0.0
    %557 = vmatpush1.msra.mxu0 0.0
    %558 = vmatprep.subr.mxu0 0.0
    %559 = vmatpush1.msra.mxu0 0.0
    %560 = vmatprep.subr.mxu0 0.0
    %561 = vmatpush1.msra.mxu0 0.0
    %562 = vmatprep.subr.mxu0 0.0
    %563 = vmatpush1.msra.mxu0 0.0
    %564 = vmatprep.subr.mxu0 0.0
    %565 = vmatpush1.msra.mxu0 0.0
    %566 = vmatprep.subr.mxu0 0.0
    %567 = vmatpush1.msra.mxu0 0.0
    %568 = vmatprep.subr.mxu0 0.0
    %569 = vmatpush1.msra.mxu0 0.0
    %570 = vmatprep.subr.mxu0 0.0
    %571 = vmatpush1.msra.mxu0 0.0
    %572 = vmatprep.subr.mxu0 0.0
    %573 = vmatpush1.msra.mxu0 0.0
    %574 = vmatprep.subr.mxu0 0.0
    %575 = vmatpush1.msra.mxu0 0.0
    %576 = vmatprep.subr.mxu0 0.0
    %577 = vmatpush1.msra.mxu0 0.0
    %578 = vmatprep.mubr.f32.mxu0 0.0
    %579 = vmatmul.mubr.f32.gmra.mrb[0].mxu0 %v512
    %v580 = vpop.f32.mrb[0].mxu0
    %v581 = vadd.f32 0.0, %v580
    %v582 = vpop.f32.mrb[0].mxu0
    %583 = vdwg.mxu0
    %584 = vrot.lane.b32.xlu0 %v236, 112
    %v585 = vpop.permute.xlu0 %584
    %586 = vrot.lane.b32.xlu0 %v236, 80
    %v587 = vpop.permute.xlu0 %586
    %v588 = vsel %vm257, %v585, 0
    %v590 = vsel %vm257, %v587, 0
    %592 = vmatprep.subr.mxu0 0.0
    %593 = vmatpush1.xpose.msra.mxu0 %v590
    %594 = vmatprep.subr.mxu0 0.0
    %595 = vmatpush1.xpose.msra.mxu0 0.0
    %596 = vmatprep.subr.mxu0 0.0
    %597 = vmatpush1.xpose.msra.mxu0 0.0
    %598 = vmatprep.subr.mxu0 0.0
    %599 = vmatpush1.xpose.msra.mxu0 0.0
    %600 = vmatprep.subr.mxu0 0.0
    %601 = vmatpush1.xpose.msra.mxu0 0.0
    %602 = vmatprep.subr.mxu0 0.0
    %603 = vmatpush1.xpose.msra.mxu0 0.0
    %604 = vmatprep.subr.mxu0 0.0
    %605 = vmatpush1.xpose.msra.mxu0 0.0
    %606 = vmatprep.subr.mxu0 0.0
    %607 = vmatpush1.xpose.msra.mxu0 0.0
    %608 = vmatprep.subr.mxu0 0.0
    %609 = vmatpush1.xpose.msra.mxu0 0.0
    %610 = vmatprep.subr.mxu0 0.0
    %611 = vmatpush1.xpose.msra.mxu0 0.0
    %612 = vmatprep.subr.mxu0 0.0
    %613 = vmatpush1.xpose.msra.mxu0 0.0
    %614 = vmatprep.subr.mxu0 0.0
    %615 = vmatpush1.xpose.msra.mxu0 0.0
    %616 = vmatprep.subr.mxu0 0.0
    %617 = vmatpush1.xpose.msra.mxu0 0.0
    %618 = vmatprep.subr.mxu0 0.0
    %619 = vmatpush1.xpose.msra.mxu0 0.0
    %620 = vmatprep.subr.mxu0 0.0
    %621 = vmatpush1.xpose.msra.mxu0 0.0
    %622 = vmatprep.subr.mxu0 0.0
    %623 = vmatpush1.xpose.msra.mxu0 0.0
    %624 = vmatprep.subr.mxu0 0.0
    %625 = vmatpush1.xpose.msra.mxu0 0.0
    %626 = vmatprep.subr.mxu0 0.0
    %627 = vmatpush1.xpose.msra.mxu0 0.0
    %628 = vmatprep.subr.mxu0 0.0
    %629 = vmatpush1.xpose.msra.mxu0 0.0
    %630 = vmatprep.subr.mxu0 0.0
    %631 = vmatpush1.xpose.msra.mxu0 0.0
    %632 = vmatprep.subr.mxu0 0.0
    %633 = vmatpush1.xpose.msra.mxu0 0.0
    %634 = vmatprep.subr.mxu0 0.0
    %635 = vmatpush1.xpose.msra.mxu0 0.0
    %636 = vmatprep.subr.mxu0 0.0
    %637 = vmatpush1.xpose.msra.mxu0 0.0
    %638 = vmatprep.subr.mxu0 0.0
    %639 = vmatpush1.xpose.msra.mxu0 0.0
    %640 = vmatprep.subr.mxu0 0.0
    %641 = vmatpush1.xpose.msra.mxu0 0.0
    %642 = vmatprep.subr.mxu0 0.0
    %643 = vmatpush1.xpose.msra.mxu0 0.0
    %644 = vmatprep.subr.mxu0 0.0
    %645 = vmatpush1.xpose.msra.mxu0 0.0
    %646 = vmatprep.subr.mxu0 0.0
    %647 = vmatpush1.xpose.msra.mxu0 0.0
    %648 = vmatprep.subr.mxu0 0.0
    %649 = vmatpush1.xpose.msra.mxu0 0.0
    %650 = vmatprep.subr.mxu0 0.0
    %651 = vmatpush1.xpose.msra.mxu0 0.0
    %652 = vmatprep.subr.mxu0 0.0
    %653 = vmatpush1.xpose.msra.mxu0 0.0
    %654 = vmatprep.subr.mxu0 0.0
    %655 = vmatpush1.xpose.msra.mxu0 0.0
    %656 = vmatprep.mubr.f32.mxu0 0.0
    %657 = vmatmul.mubr.f32.gmra.mrb[0].mxu0 %v588
    %v658 = vpop.f32.mrb[0].mxu0
    %v659 = vadd.f32 %v247, %v658
    %v660 = vpop.f32.mrb[0].mxu0
    %661 = vdwg.mxu0
    %662 = vrot.lane.b32.xlu0 %v239, 112
    %v663 = vpop.permute.xlu0 %662
    %664 = vrot.lane.b32.xlu0 %v239, 80
    %v665 = vpop.permute.xlu0 %664
    %v666 = vsel %vm257, %v663, 0
    %v668 = vsel %vm257, %v665, 0
    %670 = vmatprep.subr.mxu0 0.0
    %671 = vmatpush1.xpose.msra.mxu0 %v668
    %672 = vmatprep.subr.mxu0 0.0
    %673 = vmatpush1.xpose.msra.mxu0 0.0
    %674 = vmatprep.subr.mxu0 0.0
    %675 = vmatpush1.xpose.msra.mxu0 0.0
    %676 = vmatprep.subr.mxu0 0.0
    %677 = vmatpush1.xpose.msra.mxu0 0.0
    %678 = vmatprep.subr.mxu0 0.0
    %679 = vmatpush1.xpose.msra.mxu0 0.0
    %680 = vmatprep.subr.mxu0 0.0
    %681 = vmatpush1.xpose.msra.mxu0 0.0
    %682 = vmatprep.subr.mxu0 0.0
    %683 = vmatpush1.xpose.msra.mxu0 0.0
    %684 = vmatprep.subr.mxu0 0.0
    %685 = vmatpush1.xpose.msra.mxu0 0.0
    %686 = vmatprep.subr.mxu0 0.0
    %687 = vmatpush1.xpose.msra.mxu0 0.0
    %688 = vmatprep.subr.mxu0 0.0
    %689 = vmatpush1.xpose.msra.mxu0 0.0
    %690 = vmatprep.subr.mxu0 0.0
    %691 = vmatpush1.xpose.msra.mxu0 0.0
    %692 = vmatprep.subr.mxu0 0.0
    %693 = vmatpush1.xpose.msra.mxu0 0.0
    %694 = vmatprep.subr.mxu0 0.0
    %695 = vmatpush1.xpose.msra.mxu0 0.0
    %696 = vmatprep.subr.mxu0 0.0
    %697 = vmatpush1.xpose.msra.mxu0 0.0
    %698 = vmatprep.subr.mxu0 0.0
    %699 = vmatpush1.xpose.msra.mxu0 0.0
    %700 = vmatprep.subr.mxu0 0.0
    %701 = vmatpush1.xpose.msra.mxu0 0.0
    %702 = vmatprep.subr.mxu0 0.0
    %703 = vmatpush1.xpose.msra.mxu0 0.0
    %704 = vmatprep.subr.mxu0 0.0
    %705 = vmatpush1.xpose.msra.mxu0 0.0
    %706 = vmatprep.subr.mxu0 0.0
    %707 = vmatpush1.xpose.msra.mxu0 0.0
    %708 = vmatprep.subr.mxu0 0.0
    %709 = vmatpush1.xpose.msra.mxu0 0.0
    %710 = vmatprep.subr.mxu0 0.0
    %711 = vmatpush1.xpose.msra.mxu0 0.0
    %712 = vmatprep.subr.mxu0 0.0
    %713 = vmatpush1.xpose.msra.mxu0 0.0
    %714 = vmatprep.subr.mxu0 0.0
    %715 = vmatpush1.xpose.msra.mxu0 0.0
    %716 = vmatprep.subr.mxu0 0.0
    %717 = vmatpush1.xpose.msra.mxu0 0.0
    %718 = vmatprep.subr.mxu0 0.0
    %719 = vmatpush1.xpose.msra.mxu0 0.0
    %720 = vmatprep.subr.mxu0 0.0
    %721 = vmatpush1.xpose.msra.mxu0 0.0
    %722 = vmatprep.subr.mxu0 0.0
    %723 = vmatpush1.xpose.msra.mxu0 0.0
    %724 = vmatprep.subr.mxu0 0.0
    %725 = vmatpush1.xpose.msra.mxu0 0.0
    %726 = vmatprep.subr.mxu0 0.0
    %727 = vmatpush1.xpose.msra.mxu0 0.0
    %728 = vmatprep.subr.mxu0 0.0
    %729 = vmatpush1.xpose.msra.mxu0 0.0
    %730 = vmatprep.subr.mxu0 0.0
    %731 = vmatpush1.xpose.msra.mxu0 0.0
    %732 = vmatprep.subr.mxu0 0.0
    %733 = vmatpush1.xpose.msra.mxu0 0.0
    %734 = vmatprep.mubr.f32.mxu0 0.0
    %735 = vmatmul.mubr.f32.gmra.mrb[0].mxu0 %v666
    %v736 = vpop.f32.mrb[0].mxu0
    %v737 = vadd.f32 %v251, %v736
    %v738 = vpop.f32.mrb[0].mxu0
    %739 = vdwg.mxu0
    %v740 = vsel %vm409, %v659, -inf
    %741 = vmax.xlane.f32.xlu0 %v740
    %v742 = vpop.xlane.xlu0 %741
    %v743 = vsel %vm409, %v737, -inf
    %744 = vmax.xlane.f32.xlu0 %v743
    %v745 = vpop.xlane.xlu0 %744
    %v746 = vsub.f32 %v659, %v742
    %v747 = vsub.f32 %v737, %v745
    %v748 = vmul.f32 %v746, 1.442695
    %v749 = vpow.pop %v748
    %v750 = vmul.f32 %v747, 1.442695
    %v751 = vpow.pop %v750
    %v752 = vsel %vm409, %v749, 0.0
    %753 = vadd.xlane.f32.xlu0 %v752
    %v754 = vpop.xlane.xlu0 %753
    %v755 = vsel %vm409, %v751, 0.0
    %756 = vadd.xlane.f32.xlu0 %v755
    %v757 = vpop.xlane.xlu0 %756
    %v758 = vrcp.pop %v754
    %v759 = vrcp.pop %v757
    %v760 = vmul.f32 %v749, %v758
    %v761 = vmul.f32 %v751, %v759
    %762 = vrot.lane.b32.xlu0 %v236, 48
    %v763 = vpop.permute.xlu0 %762
    %v766 = vsel %vm409, %v760, 0
    %768 = vmatprep.subr.mxu0 0.0
    %769 = vmatpush1.msra.mxu0 %v763
    %770 = vmatprep.subr.mxu0 0.0
    %771 = vmatpush1.msra.mxu0 0.0
    %772 = vmatprep.subr.mxu0 0.0
    %773 = vmatpush1.msra.mxu0 0.0
    %774 = vmatprep.subr.mxu0 0.0
    %775 = vmatpush1.msra.mxu0 0.0
    %776 = vmatprep.subr.mxu0 0.0
    %777 = vmatpush1.msra.mxu0 0.0
    %778 = vmatprep.subr.mxu0 0.0
    %779 = vmatpush1.msra.mxu0 0.0
    %780 = vmatprep.subr.mxu0 0.0
    %781 = vmatpush1.msra.mxu0 0.0
    %782 = vmatprep.subr.mxu0 0.0
    %783 = vmatpush1.msra.mxu0 0.0
    %784 = vmatprep.subr.mxu0 0.0
    %785 = vmatpush1.msra.mxu0 0.0
    %786 = vmatprep.subr.mxu0 0.0
    %787 = vmatpush1.msra.mxu0 0.0
    %788 = vmatprep.subr.mxu0 0.0
    %789 = vmatpush1.msra.mxu0 0.0
    %790 = vmatprep.subr.mxu0 0.0
    %791 = vmatpush1.msra.mxu0 0.0
    %792 = vmatprep.subr.mxu0 0.0
    %793 = vmatpush1.msra.mxu0 0.0
    %794 = vmatprep.subr.mxu0 0.0
    %795 = vmatpush1.msra.mxu0 0.0
    %796 = vmatprep.subr.mxu0 0.0
    %797 = vmatpush1.msra.mxu0 0.0
    %798 = vmatprep.subr.mxu0 0.0
    %799 = vmatpush1.msra.mxu0 0.0
    %800 = vmatprep.subr.mxu0 0.0
    %801 = vmatpush1.msra.mxu0 0.0
    %802 = vmatprep.subr.mxu0 0.0
    %803 = vmatpush1.msra.mxu0 0.0
    %804 = vmatprep.subr.mxu0 0.0
    %805 = vmatpush1.msra.mxu0 0.0
    %806 = vmatprep.subr.mxu0 0.0
    %807 = vmatpush1.msra.mxu0 0.0
    %808 = vmatprep.subr.mxu0 0.0
    %809 = vmatpush1.msra.mxu0 0.0
    %810 = vmatprep.subr.mxu0 0.0
    %811 = vmatpush1.msra.mxu0 0.0
    %812 = vmatprep.subr.mxu0 0.0
    %813 = vmatpush1.msra.mxu0 0.0
    %814 = vmatprep.subr.mxu0 0.0
    %815 = vmatpush1.msra.mxu0 0.0
    %816 = vmatprep.subr.mxu0 0.0
    %817 = vmatpush1.msra.mxu0 0.0
    %818 = vmatprep.subr.mxu0 0.0
    %819 = vmatpush1.msra.mxu0 0.0
    %820 = vmatprep.subr.mxu0 0.0
    %821 = vmatpush1.msra.mxu0 0.0
    %822 = vmatprep.subr.mxu0 0.0
    %823 = vmatpush1.msra.mxu0 0.0
    %824 = vmatprep.subr.mxu0 0.0
    %825 = vmatpush1.msra.mxu0 0.0
    %826 = vmatprep.subr.mxu0 0.0
    %827 = vmatpush1.msra.mxu0 0.0
    %828 = vmatprep.subr.mxu0 0.0
    %829 = vmatpush1.msra.mxu0 0.0
    %830 = vmatprep.subr.mxu0 0.0
    %831 = vmatpush1.msra.mxu0 0.0
    %832 = vmatprep.mubr.f32.mxu0 0.0
    %833 = vmatmul.mubr.f32.gmra.mrb[0].mxu0 %v766
    %v834 = vpop.f32.mrb[0].mxu0
    %v835 = vadd.f32 0.0, %v834
    %v836 = vpop.f32.mrb[0].mxu0
    %837 = vdwg.mxu0
    %838 = vrot.lane.b32.xlu0 %v239, 48
    %v839 = vpop.permute.xlu0 %838
    %v842 = vsel %vm409, %v761, 0
    %844 = vmatprep.subr.mxu0 0.0
    %845 = vmatpush1.msra.mxu0 %v839
    %846 = vmatprep.subr.mxu0 0.0
    %847 = vmatpush1.msra.mxu0 0.0
    %848 = vmatprep.subr.mxu0 0.0
    %849 = vmatpush1.msra.mxu0 0.0
    %850 = vmatprep.subr.mxu0 0.0
    %851 = vmatpush1.msra.mxu0 0.0
    %852 = vmatprep.subr.mxu0 0.0
    %853 = vmatpush1.msra.mxu0 0.0
    %854 = vmatprep.subr.mxu0 0.0
    %855 = vmatpush1.msra.mxu0 0.0
    %856 = vmatprep.subr.mxu0 0.0
    %857 = vmatpush1.msra.mxu0 0.0
    %858 = vmatprep.subr.mxu0 0.0
    %859 = vmatpush1.msra.mxu0 0.0
    %860 = vmatprep.subr.mxu0 0.0
    %861 = vmatpush1.msra.mxu0 0.0
    %862 = vmatprep.subr.mxu0 0.0
    %863 = vmatpush1.msra.mxu0 0.0
    %864 = vmatprep.subr.mxu0 0.0
    %865 = vmatpush1.msra.mxu0 0.0
    %866 = vmatprep.subr.mxu0 0.0
    %867 = vmatpush1.msra.mxu0 0.0
    %868 = vmatprep.subr.mxu0 0.0
    %869 = vmatpush1.msra.mxu0 0.0
    %870 = vmatprep.subr.mxu0 0.0
    %871 = vmatpush1.msra.mxu0 0.0
    %872 = vmatprep.subr.mxu0 0.0
    %873 = vmatpush1.msra.mxu0 0.0
    %874 = vmatprep.subr.mxu0 0.0
    %875 = vmatpush1.msra.mxu0 0.0
    %876 = vmatprep.subr.mxu0 0.0
    %877 = vmatpush1.msra.mxu0 0.0
    %878 = vmatprep.subr.mxu0 0.0
    %879 = vmatpush1.msra.mxu0 0.0
    %880 = vmatprep.subr.mxu0 0.0
    %881 = vmatpush1.msra.mxu0 0.0
    %882 = vmatprep.subr.mxu0 0.0
    %883 = vmatpush1.msra.mxu0 0.0
    %884 = vmatprep.subr.mxu0 0.0
    %885 = vmatpush1.msra.mxu0 0.0
    %886 = vmatprep.subr.mxu0 0.0
    %887 = vmatpush1.msra.mxu0 0.0
    %888 = vmatprep.subr.mxu0 0.0
    %889 = vmatpush1.msra.mxu0 0.0
    %890 = vmatprep.subr.mxu0 0.0
    %891 = vmatpush1.msra.mxu0 0.0
    %892 = vmatprep.subr.mxu0 0.0
    %893 = vmatpush1.msra.mxu0 0.0
    %894 = vmatprep.subr.mxu0 0.0
    %895 = vmatpush1.msra.mxu0 0.0
    %896 = vmatprep.subr.mxu0 0.0
    %897 = vmatpush1.msra.mxu0 0.0
    %898 = vmatprep.subr.mxu0 0.0
    %899 = vmatpush1.msra.mxu0 0.0
    %900 = vmatprep.subr.mxu0 0.0
    %901 = vmatpush1.msra.mxu0 0.0
    %902 = vmatprep.subr.mxu0 0.0
    %903 = vmatpush1.msra.mxu0 0.0
    %904 = vmatprep.subr.mxu0 0.0
    %905 = vmatpush1.msra.mxu0 0.0
    %906 = vmatprep.subr.mxu0 0.0
    %907 = vmatpush1.msra.mxu0 0.0
    %908 = vmatprep.mubr.f32.mxu0 0.0
    %909 = vmatmul.mubr.f32.gmra.mrb[0].mxu0 %v842
    %v910 = vpop.f32.mrb[0].mxu0
    %v911 = vadd.f32 0.0, %v910
    %v912 = vpop.f32.mrb[0].mxu0
    %913 = vdwg.mxu0
    %916 = vrot.lane.b32.xlu0 %v835, 16
    %v917 = vpop.permute.xlu0 %916
    %918 = vrot.lane.b32.xlu0 %v911, 16
    %v919 = vpop.permute.xlu0 %918
    %v922 = vsel %vm257, %v505, %v917
    %v923 = vsel %vm257, %v581, %v919
    %v924 = vpack.c.bf16 %v923, %v922
    %v929 = vunpack.c.l.b16 %v143
    %v930 = vunpack.c.l.b16 %v144
    %v931 = vunpack.c.l.b16 %v145
    %v932 = vunpack.c.l.b16 %v146
    %v933 = vpack.c.b16 %v930, %v929
    %v934 = vpack.c.b16 %v932, %v931
    %v938 = vsel %vm161, %v924, 0
    %940 = vmatprep.subr.bf16.mxu0 0
    %941 = vmatpush1.bf16.msra.mxu0 %v933
    %942 = vmatprep.subr.bf16.mxu0 0
    %943 = vmatpush1.bf16.msra.mxu0 %v934
    %944 = vmatprep.subr.bf16.mxu0 0
    %945 = vmatpush1.bf16.msra.mxu0 0
    %946 = vmatprep.subr.bf16.mxu0 0
    %947 = vmatpush1.bf16.msra.mxu0 0
    %948 = vmatprep.subr.bf16.mxu0 0
    %949 = vmatpush1.bf16.msra.mxu0 0
    %950 = vmatprep.subr.bf16.mxu0 0
    %951 = vmatpush1.bf16.msra.mxu0 0
    %952 = vmatprep.subr.bf16.mxu0 0
    %953 = vmatpush1.bf16.msra.mxu0 0
    %954 = vmatprep.subr.bf16.mxu0 0
    %955 = vmatpush1.bf16.msra.mxu0 0
    %956 = vmatprep.subr.bf16.mxu0 0
    %957 = vmatpush1.bf16.msra.mxu0 0
    %958 = vmatprep.subr.bf16.mxu0 0
    %959 = vmatpush1.bf16.msra.mxu0 0
    %960 = vmatprep.subr.bf16.mxu0 0
    %961 = vmatpush1.bf16.msra.mxu0 0
    %962 = vmatprep.subr.bf16.mxu0 0
    %963 = vmatpush1.bf16.msra.mxu0 0
    %964 = vmatprep.subr.bf16.mxu0 0
    %965 = vmatpush1.bf16.msra.mxu0 0
    %966 = vmatprep.subr.bf16.mxu0 0
    %967 = vmatpush1.bf16.msra.mxu0 0
    %968 = vmatprep.subr.bf16.mxu0 0
    %969 = vmatpush1.bf16.msra.mxu0 0
    %970 = vmatprep.subr.bf16.mxu0 0
    %971 = vmatpush1.bf16.msra.mxu0 0
    %972 = vmatprep.mubr.bf16.mxu0 0
    %973 = vmatmul.mubr.bf16.gmra.mrb[0].mxu0 %v938
    %v974 = vpop.f32.mrb[0].mxu0
    %v975 = vadd.f32 0.0, %v974
    %v976 = vpop.f32.mrb[0].mxu0
    %v977 = vpop.f32.mrb[0].mxu0
    %v978 = vadd.f32 0.0, %v977
    %v979 = vpop.f32.mrb[0].mxu0
    %980 = vdwg.mxu0
    %v981 = vadd.f32 %v125, %v975
    %v982 = vadd.f32 %v128, %v978
    %v983 = vmul.f32 %v981, %v981
    %v984 = vmul.f32 %v982, %v982
    %v985 = vsel %vm161, %v983, 0.0
    %986 = vadd.xlane.f32.xlu0 %v985
    %v987 = vpop.xlane.xlu0 %986
    %v988 = vsel %vm161, %v984, 0.0
    %989 = vadd.xlane.f32.xlu0 %v988
    %v990 = vpop.xlane.xlu0 %989
    %v991 = vmul.f32 %v987, %v168
    %v992 = vmul.f32 %v990, %v168
    %v993 = vadd.f32 %v991, 1e-06
    %v994 = vadd.f32 %v992, 1e-06
    %v995 = vrsqrt.pop %v993
    %v996 = vrsqrt.pop %v994
    %v997 = vmul.f32 %v981, %v995
    %v998 = vmul.f32 %v982, %v996
    %v1000 = vlaneseq
    %v1001 = vshrl.u32 %v1000, 7
    %v1002 = vsub.s32 0, %v1001
    %v1003 = vrot.slane %v138, %v1002
    %v1005 = vmul.f32 %v997, %v1003
    %v1006 = vmul.f32 %v998, %v1003
    %v1007 = vpack.c.bf16 %v1006, %v1005
    %v1012 = vunpack.c.l.b16 %v147
    %v1013 = vunpack.c.l.b16 %v148
    %v1014 = vunpack.c.l.b16 %v149
    %v1015 = vunpack.c.l.b16 %v150
    %v1016 = vpack.c.b16 %v1013, %v1012
    %v1017 = vpack.c.b16 %v1015, %v1014
    %v1021 = vsel %vm161, %v1007, 0
    %1023 = vmatprep.subr.bf16.mxu0 0
    %1024 = vmatpush1.bf16.msra.mxu0 %v1016
    %1025 = vmatprep.subr.bf16.mxu0 0
    %1026 = vmatpush1.bf16.msra.mxu0 %v1017
    %1027 = vmatprep.subr.bf16.mxu0 0
    %1028 = vmatpush1.bf16.msra.mxu0 0
    %1029 = vmatprep.subr.bf16.mxu0 0
    %1030 = vmatpush1.bf16.msra.mxu0 0
    %1031 = vmatprep.subr.bf16.mxu0 0
    %1032 = vmatpush1.bf16.msra.mxu0 0
    %1033 = vmatprep.subr.bf16.mxu0 0
    %1034 = vmatpush1.bf16.msra.mxu0 0
    %1035 = vmatprep.subr.bf16.mxu0 0
    %1036 = vmatpush1.bf16.msra.mxu0 0
    %1037 = vmatprep.subr.bf16.mxu0 0
    %1038 = vmatpush1.bf16.msra.mxu0 0
    %1039 = vmatprep.subr.bf16.mxu0 0
    %1040 = vmatpush1.bf16.msra.mxu0 0
    %1041 = vmatprep.subr.bf16.mxu0 0
    %1042 = vmatpush1.bf16.msra.mxu0 0
    %1043 = vmatprep.subr.bf16.mxu0 0
    %1044 = vmatpush1.bf16.msra.mxu0 0
    %1045 = vmatprep.subr.bf16.mxu0 0
    %1046 = vmatpush1.bf16.msra.mxu0 0
    %1047 = vmatprep.subr.bf16.mxu0 0
    %1048 = vmatpush1.bf16.msra.mxu0 0
    %1049 = vmatprep.subr.bf16.mxu0 0
    %1050 = vmatpush1.bf16.msra.mxu0 0
    %1051 = vmatprep.subr.bf16.mxu0 0
    %1052 = vmatpush1.bf16.msra.mxu0 0
    %1053 = vmatprep.subr.bf16.mxu0 0
    %1054 = vmatpush1.bf16.msra.mxu0 0
    %1055 = vmatprep.mubr.bf16.mxu0 0
    %1056 = vmatmul.mubr.bf16.gmra.mrb[0].mxu0 %v1021
    %v1057 = vpop.f32.mrb[0].mxu0
    %v1058 = vadd.f32 0.0, %v1057
    %v1059 = vpop.f32.mrb[0].mxu0
    %v1060 = vpop.f32.mrb[0].mxu0
    %v1061 = vadd.f32 0.0, %v1060
    %v1062 = vpop.f32.mrb[0].mxu0
    %1063 = vdwg.mxu0
    %v1064 = vmax.f32 %v1058, 0.0
    %v1065 = vmax.f32 %v1061, 0.0
    %v1066 = vpack.c.bf16 %v1065, %v1064
    %v1075 = vunpack.c.l.b16 %v151
    %v1076 = vunpack.c.l.b16 %v152
    %v1077 = vunpack.c.l.b16 %v153
    %v1078 = vunpack.c.l.b16 %v154
    %v1079 = vunpack.c.l.b16 %v155
    %v1080 = vunpack.c.l.b16 %v156
    %v1081 = vunpack.c.l.b16 %v157
    %v1082 = vunpack.c.l.b16 %v158
    %v1083 = vpack.c.b16 %v1076, %v1075
    %v1084 = vpack.c.b16 %v1078, %v1077
    %v1085 = vpack.c.b16 %v1080, %v1079
    %v1086 = vpack.c.b16 %v1082, %v1081
    %v1092 = vsel %vm86, %v1066, 0
    %1094 = vmatprep.subr.bf16.mxu0 0
    %1095 = vmatpush1.bf16.msra.mxu0 %v1083
    %1096 = vmatprep.subr.bf16.mxu0 0
    %1097 = vmatpush1.bf16.msra.mxu0 %v1084
    %1098 = vmatprep.subr.bf16.mxu0 0
    %1099 = vmatpush1.bf16.msra.mxu0 %v1085
    %1100 = vmatprep.subr.bf16.mxu0 0
    %1101 = vmatpush1.bf16.msra.mxu0 %v1086
    %1102 = vmatprep.subr.bf16.mxu0 0
    %1103 = vmatpush1.bf16.msra.mxu0 0
    %1104 = vmatprep.subr.bf16.mxu0 0
    %1105 = vmatpush1.bf16.msra.mxu0 0
    %1106 = vmatprep.subr.bf16.mxu0 0
    %1107 = vmatpush1.bf16.msra.mxu0 0
    %1108 = vmatprep.subr.bf16.mxu0 0
    %1109 = vmatpush1.bf16.msra.mxu0 0
    %1110 = vmatprep.subr.bf16.mxu0 0
    %1111 = vmatpush1.bf16.msra.mxu0 0
    %1112 = vmatprep.subr.bf16.mxu0 0
    %1113 = vmatpush1.bf16.msra.mxu0 0
    %1114 = vmatprep.subr.bf16.mxu0 0
    %1115 = vmatpush1.bf16.msra.mxu0 0
    %1116 = vmatprep.subr.bf16.mxu0 0
    %1117 = vmatpush1.bf16.msra.mxu0 0
    %1118 = vmatprep.subr.bf16.mxu0 0
    %1119 = vmatpush1.bf16.msra.mxu0 0
    %1120 = vmatprep.subr.bf16.mxu0 0
    %1121 = vmatpush1.bf16.msra.mxu0 0
    %1122 = vmatprep.subr.bf16.mxu0 0
    %1123 = vmatpush1.bf16.msra.mxu0 0
    %1124 = vmatprep.subr.bf16.mxu0 0
    %1125 = vmatpush1.bf16.msra.mxu0 0
    %1126 = vmatprep.mubr.bf16.mxu0 0
    %1127 = vmatmul.mubr.bf16.gmra.mrb[0].mxu0 %v1092
    %v1128 = vpop.f32.mrb[0].mxu0
    %v1129 = vadd.f32 0.0, %v1128
    %v1130 = vpop.f32.mrb[0].mxu0
    %v1131 = vpop.f32.mrb[0].mxu0
    %v1132 = vadd.f32 0.0, %v1131
    %v1133 = vpop.f32.mrb[0].mxu0
    %1134 = vdwg.mxu0
    %v1135 = vadd.f32 %v981, %v1129
    %v1136 = vadd.f32 %v982, %v1132
    %s1137 = scalar_lea.vmem %s3, 1
    %v1138 = vld [vmem:[%s1137] sm:$0x1]
    %s1139 = scalar_lea.vmem %s6, 1
    %v1140 = vld [vmem:[%s1139] sm:$0x1]
    %s1141 = scalar_lea.vmem %s4, 16
    %v1142 = vld [vmem:[%s1141] sm:$0xf]
    %v1143 = vld [vmem:[%s1141 + $0x4] sm:$0xf]
    %v1144 = vld [vmem:[%s1141 + $0x8] sm:$0xf]
    %v1145 = vld [vmem:[%s1141 + $0xc] sm:$0xf]
    %s1146 = scalar_lea.vmem %s5, 16
    %v1147 = vld [vmem:[%s1146] sm:$0xf]
    %v1148 = vld [vmem:[%s1146 + $0x4] sm:$0xf]
    %v1149 = vld [vmem:[%s1146 + $0x8] sm:$0xf]
    %v1150 = vld [vmem:[%s1146 + $0xc] sm:$0xf]
    %s1151 = scalar_lea.vmem %s7, 16
    %v1152 = vld [vmem:[%s1151] sm:$0xf]
    %v1153 = vld [vmem:[%s1151 + $0x4] sm:$0xf]
    %v1154 = vld [vmem:[%s1151 + $0x8] sm:$0xf]
    %v1155 = vld [vmem:[%s1151 + $0xc] sm:$0xf]
    %s1156 = scalar_lea.vmem %s8, 32
    %v1157 = vld [vmem:[%s1156] sm:$0xf]
    %v1158 = vld [vmem:[%s1156 + $0x4] sm:$0xf]
    %v1159 = vld [vmem:[%s1156 + $0x8] sm:$0xf]
    %v1160 = vld [vmem:[%s1156 + $0xc] sm:$0xf]
    %v1161 = vld [vmem:[%s1156 + $0x10] sm:$0xf]
    %v1162 = vld [vmem:[%s1156 + $0x14] sm:$0xf]
    %v1163 = vld [vmem:[%s1156 + $0x18] sm:$0xf]
    %v1164 = vld [vmem:[%s1156 + $0x1c] sm:$0xf]
    %v1165 = vmul.f32 %v1135, %v1135
    %v1166 = vmul.f32 %v1136, %v1136
    %v1167 = vsel %vm161, %v1165, 0.0
    %1168 = vadd.xlane.f32.xlu0 %v1167
    %v1169 = vpop.xlane.xlu0 %1168
    %v1170 = vsel %vm161, %v1166, 0.0
    %1171 = vadd.xlane.f32.xlu0 %v1170
    %v1172 = vpop.xlane.xlu0 %1171
    %v1173 = vmul.f32 %v1169, %v168
    %v1174 = vmul.f32 %v1172, %v168
    %v1175 = vadd.f32 %v1173, 1e-06
    %v1176 = vadd.f32 %v1174, 1e-06
    %v1177 = vrsqrt.pop %v1175
    %v1178 = vrsqrt.pop %v1176
    %v1179 = vmul.f32 %v1135, %v1177
    %v1180 = vmul.f32 %v1136, %v1178
    %v1182 = vlaneseq
    %v1183 = vshrl.u32 %v1182, 7
    %v1184 = vsub.s32 0, %v1183
    %v1185 = vrot.slane %v1138, %v1184
    %v1187 = vmul.f32 %v1179, %v1185
    %v1188 = vmul.f32 %v1180, %v1185
    %v1189 = vpack.c.bf16 %v1188, %v1187
    %v1194 = vunpack.c.l.b16 %v1142
    %v1195 = vunpack.c.l.b16 %v1143
    %v1196 = vunpack.c.l.b16 %v1144
    %v1197 = vunpack.c.l.b16 %v1145
    %v1198 = vpack.c.b16 %v1195, %v1194
    %v1199 = vpack.c.b16 %v1197, %v1196
    %v1203 = vsel %vm161, %v1189, 0
    %1205 = vmatprep.subr.bf16.mxu0 0
    %1206 = vmatpush1.bf16.msra.mxu0 %v1198
    %1207 = vmatprep.subr.bf16.mxu0 0
    %1208 = vmatpush1.bf16.msra.mxu0 %v1199
    %1209 = vmatprep.subr.bf16.mxu0 0
    %1210 = vmatpush1.bf16.msra.mxu0 0
    %1211 = vmatprep.subr.bf16.mxu0 0
    %1212 = vmatpush1.bf16.msra.mxu0 0
    %1213 = vmatprep.subr.bf16.mxu0 0
    %1214 = vmatpush1.bf16.msra.mxu0 0
    %1215 = vmatprep.subr.bf16.mxu0 0
    %1216 = vmatpush1.bf16.msra.mxu0 0
    %1217 = vmatprep.subr.bf16.mxu0 0
    %1218 = vmatpush1.bf16.msra.mxu0 0
    %1219 = vmatprep.subr.bf16.mxu0 0
    %1220 = vmatpush1.bf16.msra.mxu0 0
    %1221 = vmatprep.subr.bf16.mxu0 0
    %1222 = vmatpush1.bf16.msra.mxu0 0
    %1223 = vmatprep.subr.bf16.mxu0 0
    %1224 = vmatpush1.bf16.msra.mxu0 0
    %1225 = vmatprep.subr.bf16.mxu0 0
    %1226 = vmatpush1.bf16.msra.mxu0 0
    %1227 = vmatprep.subr.bf16.mxu0 0
    %1228 = vmatpush1.bf16.msra.mxu0 0
    %1229 = vmatprep.subr.bf16.mxu0 0
    %1230 = vmatpush1.bf16.msra.mxu0 0
    %1231 = vmatprep.subr.bf16.mxu0 0
    %1232 = vmatpush1.bf16.msra.mxu0 0
    %1233 = vmatprep.subr.bf16.mxu0 0
    %1234 = vmatpush1.bf16.msra.mxu0 0
    %1235 = vmatprep.subr.bf16.mxu0 0
    %1236 = vmatpush1.bf16.msra.mxu0 0
    %1237 = vmatprep.mubr.bf16.mxu0 0
    %1238 = vmatmul.mubr.bf16.gmra.mrb[0].mxu0 %v1203
    %v1239 = vpop.f32.mrb[0].mxu0
    %v1240 = vadd.f32 0.0, %v1239
    %v1241 = vpop.f32.mrb[0].mxu0
    %v1242 = vpop.f32.mrb[0].mxu0
    %v1243 = vadd.f32 0.0, %v1242
    %v1244 = vpop.f32.mrb[0].mxu0
    %1245 = vdwg.mxu0
    %1247 = vrot.lane.b32.xlu0 %v1240, 96
    %v1248 = vpop.permute.xlu0 %1247
    %v1249 = vsel %vm257, %v1240, 0
    %v1251 = vsel %vm257, %v1248, 0
    %1253 = vmatprep.subr.mxu0 0.0
    %1254 = vmatpush1.xpose.msra.mxu0 %v1251
    %1255 = vmatprep.subr.mxu0 0.0
    %1256 = vmatpush1.xpose.msra.mxu0 0.0
    %1257 = vmatprep.subr.mxu0 0.0
    %1258 = vmatpush1.xpose.msra.mxu0 0.0
    %1259 = vmatprep.subr.mxu0 0.0
    %1260 = vmatpush1.xpose.msra.mxu0 0.0
    %1261 = vmatprep.subr.mxu0 0.0
    %1262 = vmatpush1.xpose.msra.mxu0 0.0
    %1263 = vmatprep.subr.mxu0 0.0
    %1264 = vmatpush1.xpose.msra.mxu0 0.0
    %1265 = vmatprep.subr.mxu0 0.0
    %1266 = vmatpush1.xpose.msra.mxu0 0.0
    %1267 = vmatprep.subr.mxu0 0.0
    %1268 = vmatpush1.xpose.msra.mxu0 0.0
    %1269 = vmatprep.subr.mxu0 0.0
    %1270 = vmatpush1.xpose.msra.mxu0 0.0
    %1271 = vmatprep.subr.mxu0 0.0
    %1272 = vmatpush1.xpose.msra.mxu0 0.0
    %1273 = vmatprep.subr.mxu0 0.0
    %1274 = vmatpush1.xpose.msra.mxu0 0.0
    %1275 = vmatprep.subr.mxu0 0.0
    %1276 = vmatpush1.xpose.msra.mxu0 0.0
    %1277 = vmatprep.subr.mxu0 0.0
    %1278 = vmatpush1.xpose.msra.mxu0 0.0
    %1279 = vmatprep.subr.mxu0 0.0
    %1280 = vmatpush1.xpose.msra.mxu0 0.0
    %1281 = vmatprep.subr.mxu0 0.0
    %1282 = vmatpush1.xpose.msra.mxu0 0.0
    %1283 = vmatprep.subr.mxu0 0.0
    %1284 = vmatpush1.xpose.msra.mxu0 0.0
    %1285 = vmatprep.subr.mxu0 0.0
    %1286 = vmatpush1.xpose.msra.mxu0 0.0
    %1287 = vmatprep.subr.mxu0 0.0
    %1288 = vmatpush1.xpose.msra.mxu0 0.0
    %1289 = vmatprep.subr.mxu0 0.0
    %1290 = vmatpush1.xpose.msra.mxu0 0.0
    %1291 = vmatprep.subr.mxu0 0.0
    %1292 = vmatpush1.xpose.msra.mxu0 0.0
    %1293 = vmatprep.subr.mxu0 0.0
    %1294 = vmatpush1.xpose.msra.mxu0 0.0
    %1295 = vmatprep.subr.mxu0 0.0
    %1296 = vmatpush1.xpose.msra.mxu0 0.0
    %1297 = vmatprep.subr.mxu0 0.0
    %1298 = vmatpush1.xpose.msra.mxu0 0.0
    %1299 = vmatprep.subr.mxu0 0.0
    %1300 = vmatpush1.xpose.msra.mxu0 0.0
    %1301 = vmatprep.subr.mxu0 0.0
    %1302 = vmatpush1.xpose.msra.mxu0 0.0
    %1303 = vmatprep.subr.mxu0 0.0
    %1304 = vmatpush1.xpose.msra.mxu0 0.0
    %1305 = vmatprep.subr.mxu0 0.0
    %1306 = vmatpush1.xpose.msra.mxu0 0.0
    %1307 = vmatprep.subr.mxu0 0.0
    %1308 = vmatpush1.xpose.msra.mxu0 0.0
    %1309 = vmatprep.subr.mxu0 0.0
    %1310 = vmatpush1.xpose.msra.mxu0 0.0
    %1311 = vmatprep.subr.mxu0 0.0
    %1312 = vmatpush1.xpose.msra.mxu0 0.0
    %1313 = vmatprep.subr.mxu0 0.0
    %1314 = vmatpush1.xpose.msra.mxu0 0.0
    %1315 = vmatprep.subr.mxu0 0.0
    %1316 = vmatpush1.xpose.msra.mxu0 0.0
    %1317 = vmatprep.mubr.f32.mxu0 0.0
    %1318 = vmatmul.mubr.f32.gmra.mrb[0].mxu0 %v1249
    %v1319 = vpop.f32.mrb[0].mxu0
    %v1320 = vadd.f32 %v247, %v1319
    %v1321 = vpop.f32.mrb[0].mxu0
    %1322 = vdwg.mxu0
    %1324 = vrot.lane.b32.xlu0 %v1243, 96
    %v1325 = vpop.permute.xlu0 %1324
    %v1326 = vsel %vm257, %v1243, 0
    %v1328 = vsel %vm257, %v1325, 0
    %1330 = vmatprep.subr.mxu0 0.0
    %1331 = vmatpush1.xpose.msra.mxu0 %v1328
    %1332 = vmatprep.subr.mxu0 0.0
    %1333 = vmatpush1.xpose.msra.mxu0 0.0
    %1334 = vmatprep.subr.mxu0 0.0
    %1335 = vmatpush1.xpose.msra.mxu0 0.0
    %1336 = vmatprep.subr.mxu0 0.0
    %1337 = vmatpush1.xpose.msra.mxu0 0.0
    %1338 = vmatprep.subr.mxu0 0.0
    %1339 = vmatpush1.xpose.msra.mxu0 0.0
    %1340 = vmatprep.subr.mxu0 0.0
    %1341 = vmatpush1.xpose.msra.mxu0 0.0
    %1342 = vmatprep.subr.mxu0 0.0
    %1343 = vmatpush1.xpose.msra.mxu0 0.0
    %1344 = vmatprep.subr.mxu0 0.0
    %1345 = vmatpush1.xpose.msra.mxu0 0.0
    %1346 = vmatprep.subr.mxu0 0.0
    %1347 = vmatpush1.xpose.msra.mxu0 0.0
    %1348 = vmatprep.subr.mxu0 0.0
    %1349 = vmatpush1.xpose.msra.mxu0 0.0
    %1350 = vmatprep.subr.mxu0 0.0
    %1351 = vmatpush1.xpose.msra.mxu0 0.0
    %1352 = vmatprep.subr.mxu0 0.0
    %1353 = vmatpush1.xpose.msra.mxu0 0.0
    %1354 = vmatprep.subr.mxu0 0.0
    %1355 = vmatpush1.xpose.msra.mxu0 0.0
    %1356 = vmatprep.subr.mxu0 0.0
    %1357 = vmatpush1.xpose.msra.mxu0 0.0
    %1358 = vmatprep.subr.mxu0 0.0
    %1359 = vmatpush1.xpose.msra.mxu0 0.0
    %1360 = vmatprep.subr.mxu0 0.0
    %1361 = vmatpush1.xpose.msra.mxu0 0.0
    %1362 = vmatprep.subr.mxu0 0.0
    %1363 = vmatpush1.xpose.msra.mxu0 0.0
    %1364 = vmatprep.subr.mxu0 0.0
    %1365 = vmatpush1.xpose.msra.mxu0 0.0
    %1366 = vmatprep.subr.mxu0 0.0
    %1367 = vmatpush1.xpose.msra.mxu0 0.0
    %1368 = vmatprep.subr.mxu0 0.0
    %1369 = vmatpush1.xpose.msra.mxu0 0.0
    %1370 = vmatprep.subr.mxu0 0.0
    %1371 = vmatpush1.xpose.msra.mxu0 0.0
    %1372 = vmatprep.subr.mxu0 0.0
    %1373 = vmatpush1.xpose.msra.mxu0 0.0
    %1374 = vmatprep.subr.mxu0 0.0
    %1375 = vmatpush1.xpose.msra.mxu0 0.0
    %1376 = vmatprep.subr.mxu0 0.0
    %1377 = vmatpush1.xpose.msra.mxu0 0.0
    %1378 = vmatprep.subr.mxu0 0.0
    %1379 = vmatpush1.xpose.msra.mxu0 0.0
    %1380 = vmatprep.subr.mxu0 0.0
    %1381 = vmatpush1.xpose.msra.mxu0 0.0
    %1382 = vmatprep.subr.mxu0 0.0
    %1383 = vmatpush1.xpose.msra.mxu0 0.0
    %1384 = vmatprep.subr.mxu0 0.0
    %1385 = vmatpush1.xpose.msra.mxu0 0.0
    %1386 = vmatprep.subr.mxu0 0.0
    %1387 = vmatpush1.xpose.msra.mxu0 0.0
    %1388 = vmatprep.subr.mxu0 0.0
    %1389 = vmatpush1.xpose.msra.mxu0 0.0
    %1390 = vmatprep.subr.mxu0 0.0
    %1391 = vmatpush1.xpose.msra.mxu0 0.0
    %1392 = vmatprep.subr.mxu0 0.0
    %1393 = vmatpush1.xpose.msra.mxu0 0.0
    %1394 = vmatprep.mubr.f32.mxu0 0.0
    %1395 = vmatmul.mubr.f32.gmra.mrb[0].mxu0 %v1326
    %v1396 = vpop.f32.mrb[0].mxu0
    %v1397 = vadd.f32 %v251, %v1396
    %v1398 = vpop.f32.mrb[0].mxu0
    %1399 = vdwg.mxu0
    %v1400 = vsel %vm409, %v1320, -inf
    %1401 = vmax.xlane.f32.xlu0 %v1400
    %v1402 = vpop.xlane.xlu0 %1401
    %v1403 = vsel %vm409, %v1397, -inf
    %1404 = vmax.xlane.f32.xlu0 %v1403
    %v1405 = vpop.xlane.xlu0 %1404
    %v1406 = vsub.f32 %v1320, %v1402
    %v1407 = vsub.f32 %v1397, %v1405
    %v1408 = vmul.f32 %v1406, 1.442695
    %v1409 = vpow.pop %v1408
    %v1410 = vmul.f32 %v1407, 1.442695
    %v1411 = vpow.pop %v1410
    %v1412 = vsel %vm409, %v1409, 0.0
    %1413 = vadd.xlane.f32.xlu0 %v1412
    %v1414 = vpop.xlane.xlu0 %1413
    %v1415 = vsel %vm409, %v1411, 0.0
    %1416 = vadd.xlane.f32.xlu0 %v1415
    %v1417 = vpop.xlane.xlu0 %1416
    %v1418 = vrcp.pop %v1414
    %v1419 = vrcp.pop %v1417
    %v1420 = vmul.f32 %v1409, %v1418
    %v1421 = vmul.f32 %v1411, %v1419
    %1422 = vrot.lane.b32.xlu0 %v1240, 64
    %v1423 = vpop.permute.xlu0 %1422
    %v1426 = vsel %vm409, %v1420, 0
    %1428 = vmatprep.subr.mxu0 0.0
    %1429 = vmatpush1.msra.mxu0 %v1423
    %1430 = vmatprep.subr.mxu0 0.0
    %1431 = vmatpush1.msra.mxu0 0.0
    %1432 = vmatprep.subr.mxu0 0.0
    %1433 = vmatpush1.msra.mxu0 0.0
    %1434 = vmatprep.subr.mxu0 0.0
    %1435 = vmatpush1.msra.mxu0 0.0
    %1436 = vmatprep.subr.mxu0 0.0
    %1437 = vmatpush1.msra.mxu0 0.0
    %1438 = vmatprep.subr.mxu0 0.0
    %1439 = vmatpush1.msra.mxu0 0.0
    %1440 = vmatprep.subr.mxu0 0.0
    %1441 = vmatpush1.msra.mxu0 0.0
    %1442 = vmatprep.subr.mxu0 0.0
    %1443 = vmatpush1.msra.mxu0 0.0
    %1444 = vmatprep.subr.mxu0 0.0
    %1445 = vmatpush1.msra.mxu0 0.0
    %1446 = vmatprep.subr.mxu0 0.0
    %1447 = vmatpush1.msra.mxu0 0.0
    %1448 = vmatprep.subr.mxu0 0.0
    %1449 = vmatpush1.msra.mxu0 0.0
    %1450 = vmatprep.subr.mxu0 0.0
    %1451 = vmatpush1.msra.mxu0 0.0
    %1452 = vmatprep.subr.mxu0 0.0
    %1453 = vmatpush1.msra.mxu0 0.0
    %1454 = vmatprep.subr.mxu0 0.0
    %1455 = vmatpush1.msra.mxu0 0.0
    %1456 = vmatprep.subr.mxu0 0.0
    %1457 = vmatpush1.msra.mxu0 0.0
    %1458 = vmatprep.subr.mxu0 0.0
    %1459 = vmatpush1.msra.mxu0 0.0
    %1460 = vmatprep.subr.mxu0 0.0
    %1461 = vmatpush1.msra.mxu0 0.0
    %1462 = vmatprep.subr.mxu0 0.0
    %1463 = vmatpush1.msra.mxu0 0.0
    %1464 = vmatprep.subr.mxu0 0.0
    %1465 = vmatpush1.msra.mxu0 0.0
    %1466 = vmatprep.subr.mxu0 0.0
    %1467 = vmatpush1.msra.mxu0 0.0
    %1468 = vmatprep.subr.mxu0 0.0
    %1469 = vmatpush1.msra.mxu0 0.0
    %1470 = vmatprep.subr.mxu0 0.0
    %1471 = vmatpush1.msra.mxu0 0.0
    %1472 = vmatprep.subr.mxu0 0.0
    %1473 = vmatpush1.msra.mxu0 0.0
    %1474 = vmatprep.subr.mxu0 0.0
    %1475 = vmatpush1.msra.mxu0 0.0
    %1476 = vmatprep.subr.mxu0 0.0
    %1477 = vmatpush1.msra.mxu0 0.0
    %1478 = vmatprep.subr.mxu0 0.0
    %1479 = vmatpush1.msra.mxu0 0.0
    %1480 = vmatprep.subr.mxu0 0.0
    %1481 = vmatpush1.msra.mxu0 0.0
    %1482 = vmatprep.subr.mxu0 0.0
    %1483 = vmatpush1.msra.mxu0 0.0
    %1484 = vmatprep.subr.mxu0 0.0
    %1485 = vmatpush1.msra.mxu0 0.0
    %1486 = vmatprep.subr.mxu0 0.0
    %1487 = vmatpush1.msra.mxu0 0.0
    %1488 = vmatprep.subr.mxu0 0.0
    %1489 = vmatpush1.msra.mxu0 0.0
    %1490 = vmatprep.subr.mxu0 0.0
    %1491 = vmatpush1.msra.mxu0 0.0
    %1492 = vmatprep.mubr.f32.mxu0 0.0
    %1493 = vmatmul.mubr.f32.gmra.mrb[0].mxu0 %v1426
    %v1494 = vpop.f32.mrb[0].mxu0
    %v1495 = vadd.f32 0.0, %v1494
    %v1496 = vpop.f32.mrb[0].mxu0
    %1497 = vdwg.mxu0
    %1498 = vrot.lane.b32.xlu0 %v1243, 64
    %v1499 = vpop.permute.xlu0 %1498
    %v1502 = vsel %vm409, %v1421, 0
    %1504 = vmatprep.subr.mxu0 0.0
    %1505 = vmatpush1.msra.mxu0 %v1499
    %1506 = vmatprep.subr.mxu0 0.0
    %1507 = vmatpush1.msra.mxu0 0.0
    %1508 = vmatprep.subr.mxu0 0.0
    %1509 = vmatpush1.msra.mxu0 0.0
    %1510 = vmatprep.subr.mxu0 0.0
    %1511 = vmatpush1.msra.mxu0 0.0
    %1512 = vmatprep.subr.mxu0 0.0
    %1513 = vmatpush1.msra.mxu0 0.0
    %1514 = vmatprep.subr.mxu0 0.0
    %1515 = vmatpush1.msra.mxu0 0.0
    %1516 = vmatprep.subr.mxu0 0.0
    %1517 = vmatpush1.msra.mxu0 0.0
    %1518 = vmatprep.subr.mxu0 0.0
    %1519 = vmatpush1.msra.mxu0 0.0
    %1520 = vmatprep.subr.mxu0 0.0
    %1521 = vmatpush1.msra.mxu0 0.0
    %1522 = vmatprep.subr.mxu0 0.0
    %1523 = vmatpush1.msra.mxu0 0.0
    %1524 = vmatprep.subr.mxu0 0.0
    %1525 = vmatpush1.msra.mxu0 0.0
    %1526 = vmatprep.subr.mxu0 0.0
    %1527 = vmatpush1.msra.mxu0 0.0
    %1528 = vmatprep.subr.mxu0 0.0
    %1529 = vmatpush1.msra.mxu0 0.0
    %1530 = vmatprep.subr.mxu0 0.0
    %1531 = vmatpush1.msra.mxu0 0.0
    %1532 = vmatprep.subr.mxu0 0.0
    %1533 = vmatpush1.msra.mxu0 0.0
    %1534 = vmatprep.subr.mxu0 0.0
    %1535 = vmatpush1.msra.mxu0 0.0
    %1536 = vmatprep.subr.mxu0 0.0
    %1537 = vmatpush1.msra.mxu0 0.0
    %1538 = vmatprep.subr.mxu0 0.0
    %1539 = vmatpush1.msra.mxu0 0.0
    %1540 = vmatprep.subr.mxu0 0.0
    %1541 = vmatpush1.msra.mxu0 0.0
    %1542 = vmatprep.subr.mxu0 0.0
    %1543 = vmatpush1.msra.mxu0 0.0
    %1544 = vmatprep.subr.mxu0 0.0
    %1545 = vmatpush1.msra.mxu0 0.0
    %1546 = vmatprep.subr.mxu0 0.0
    %1547 = vmatpush1.msra.mxu0 0.0
    %1548 = vmatprep.subr.mxu0 0.0
    %1549 = vmatpush1.msra.mxu0 0.0
    %1550 = vmatprep.subr.mxu0 0.0
    %1551 = vmatpush1.msra.mxu0 0.0
    %1552 = vmatprep.subr.mxu0 0.0
    %1553 = vmatpush1.msra.mxu0 0.0
    %1554 = vmatprep.subr.mxu0 0.0
    %1555 = vmatpush1.msra.mxu0 0.0
    %1556 = vmatprep.subr.mxu0 0.0
    %1557 = vmatpush1.msra.mxu0 0.0
    %1558 = vmatprep.subr.mxu0 0.0
    %1559 = vmatpush1.msra.mxu0 0.0
    %1560 = vmatprep.subr.mxu0 0.0
    %1561 = vmatpush1.msra.mxu0 0.0
    %1562 = vmatprep.subr.mxu0 0.0
    %1563 = vmatpush1.msra.mxu0 0.0
    %1564 = vmatprep.subr.mxu0 0.0
    %1565 = vmatpush1.msra.mxu0 0.0
    %1566 = vmatprep.subr.mxu0 0.0
    %1567 = vmatpush1.msra.mxu0 0.0
    %1568 = vmatprep.mubr.f32.mxu0 0.0
    %1569 = vmatmul.mubr.f32.gmra.mrb[0].mxu0 %v1502
    %v1570 = vpop.f32.mrb[0].mxu0
    %v1571 = vadd.f32 0.0, %v1570
    %v1572 = vpop.f32.mrb[0].mxu0
    %1573 = vdwg.mxu0
    %1574 = vrot.lane.b32.xlu0 %v1240, 112
    %v1575 = vpop.permute.xlu0 %1574
    %1576 = vrot.lane.b32.xlu0 %v1240, 80
    %v1577 = vpop.permute.xlu0 %1576
    %v1578 = vsel %vm257, %v1575, 0
    %v1580 = vsel %vm257, %v1577, 0
    %1582 = vmatprep.subr.mxu0 0.0
    %1583 = vmatpush1.xpose.msra.mxu0 %v1580
    %1584 = vmatprep.subr.mxu0 0.0
    %1585 = vmatpush1.xpose.msra.mxu0 0.0
    %1586 = vmatprep.subr.mxu0 0.0
    %1587 = vmatpush1.xpose.msra.mxu0 0.0
    %1588 = vmatprep.subr.mxu0 0.0
    %1589 = vmatpush1.xpose.msra.mxu0 0.0
    %1590 = vmatprep.subr.mxu0 0.0
    %1591 = vmatpush1.xpose.msra.mxu0 0.0
    %1592 = vmatprep.subr.mxu0 0.0
    %1593 = vmatpush1.xpose.msra.mxu0 0.0
    %1594 = vmatprep.subr.mxu0 0.0
    %1595 = vmatpush1.xpose.msra.mxu0 0.0
    %1596 = vmatprep.subr.mxu0 0.0
    %1597 = vmatpush1.xpose.msra.mxu0 0.0
    %1598 = vmatprep.subr.mxu0 0.0
    %1599 = vmatpush1.xpose.msra.mxu0 0.0
    %1600 = vmatprep.subr.mxu0 0.0
    %1601 = vmatpush1.xpose.msra.mxu0 0.0
    %1602 = vmatprep.subr.mxu0 0.0
    %1603 = vmatpush1.xpose.msra.mxu0 0.0
    %1604 = vmatprep.subr.mxu0 0.0
    %1605 = vmatpush1.xpose.msra.mxu0 0.0
    %1606 = vmatprep.subr.mxu0 0.0
    %1607 = vmatpush1.xpose.msra.mxu0 0.0
    %1608 = vmatprep.subr.mxu0 0.0
    %1609 = vmatpush1.xpose.msra.mxu0 0.0
    %1610 = vmatprep.subr.mxu0 0.0
    %1611 = vmatpush1.xpose.msra.mxu0 0.0
    %1612 = vmatprep.subr.mxu0 0.0
    %1613 = vmatpush1.xpose.msra.mxu0 0.0
    %1614 = vmatprep.subr.mxu0 0.0
    %1615 = vmatpush1.xpose.msra.mxu0 0.0
    %1616 = vmatprep.subr.mxu0 0.0
    %1617 = vmatpush1.xpose.msra.mxu0 0.0
    %1618 = vmatprep.subr.mxu0 0.0
    %1619 = vmatpush1.xpose.msra.mxu0 0.0
    %1620 = vmatprep.subr.mxu0 0.0
    %1621 = vmatpush1.xpose.msra.mxu0 0.0
    %1622 = vmatprep.subr.mxu0 0.0
    %1623 = vmatpush1.xpose.msra.mxu0 0.0
    %1624 = vmatprep.subr.mxu0 0.0
    %1625 = vmatpush1.xpose.msra.mxu0 0.0
    %1626 = vmatprep.subr.mxu0 0.0
    %1627 = vmatpush1.xpose.msra.mxu0 0.0
    %1628 = vmatprep.subr.mxu0 0.0
    %1629 = vmatpush1.xpose.msra.mxu0 0.0
    %1630 = vmatprep.subr.mxu0 0.0
    %1631 = vmatpush1.xpose.msra.mxu0 0.0
    %1632 = vmatprep.subr.mxu0 0.0
    %1633 = vmatpush1.xpose.msra.mxu0 0.0
    %1634 = vmatprep.subr.mxu0 0.0
    %1635 = vmatpush1.xpose.msra.mxu0 0.0
    %1636 = vmatprep.subr.mxu0 0.0
    %1637 = vmatpush1.xpose.msra.mxu0 0.0
    %1638 = vmatprep.subr.mxu0 0.0
    %1639 = vmatpush1.xpose.msra.mxu0 0.0
    %1640 = vmatprep.subr.mxu0 0.0
    %1641 = vmatpush1.xpose.msra.mxu0 0.0
    %1642 = vmatprep.subr.mxu0 0.0
    %1643 = vmatpush1.xpose.msra.mxu0 0.0
    %1644 = vmatprep.subr.mxu0 0.0
    %1645 = vmatpush1.xpose.msra.mxu0 0.0
    %1646 = vmatprep.mubr.f32.mxu0 0.0
    %1647 = vmatmul.mubr.f32.gmra.mrb[0].mxu0 %v1578
    %v1648 = vpop.f32.mrb[0].mxu0
    %v1649 = vadd.f32 %v247, %v1648
    %v1650 = vpop.f32.mrb[0].mxu0
    %1651 = vdwg.mxu0
    %1652 = vrot.lane.b32.xlu0 %v1243, 112
    %v1653 = vpop.permute.xlu0 %1652
    %1654 = vrot.lane.b32.xlu0 %v1243, 80
    %v1655 = vpop.permute.xlu0 %1654
    %v1656 = vsel %vm257, %v1653, 0
    %v1658 = vsel %vm257, %v1655, 0
    %1660 = vmatprep.subr.mxu0 0.0
    %1661 = vmatpush1.xpose.msra.mxu0 %v1658
    %1662 = vmatprep.subr.mxu0 0.0
    %1663 = vmatpush1.xpose.msra.mxu0 0.0
    %1664 = vmatprep.subr.mxu0 0.0
    %1665 = vmatpush1.xpose.msra.mxu0 0.0
    %1666 = vmatprep.subr.mxu0 0.0
    %1667 = vmatpush1.xpose.msra.mxu0 0.0
    %1668 = vmatprep.subr.mxu0 0.0
    %1669 = vmatpush1.xpose.msra.mxu0 0.0
    %1670 = vmatprep.subr.mxu0 0.0
    %1671 = vmatpush1.xpose.msra.mxu0 0.0
    %1672 = vmatprep.subr.mxu0 0.0
    %1673 = vmatpush1.xpose.msra.mxu0 0.0
    %1674 = vmatprep.subr.mxu0 0.0
    %1675 = vmatpush1.xpose.msra.mxu0 0.0
    %1676 = vmatprep.subr.mxu0 0.0
    %1677 = vmatpush1.xpose.msra.mxu0 0.0
    %1678 = vmatprep.subr.mxu0 0.0
    %1679 = vmatpush1.xpose.msra.mxu0 0.0
    %1680 = vmatprep.subr.mxu0 0.0
    %1681 = vmatpush1.xpose.msra.mxu0 0.0
    %1682 = vmatprep.subr.mxu0 0.0
    %1683 = vmatpush1.xpose.msra.mxu0 0.0
    %1684 = vmatprep.subr.mxu0 0.0
    %1685 = vmatpush1.xpose.msra.mxu0 0.0
    %1686 = vmatprep.subr.mxu0 0.0
    %1687 = vmatpush1.xpose.msra.mxu0 0.0
    %1688 = vmatprep.subr.mxu0 0.0
    %1689 = vmatpush1.xpose.msra.mxu0 0.0
    %1690 = vmatprep.subr.mxu0 0.0
    %1691 = vmatpush1.xpose.msra.mxu0 0.0
    %1692 = vmatprep.subr.mxu0 0.0
    %1693 = vmatpush1.xpose.msra.mxu0 0.0
    %1694 = vmatprep.subr.mxu0 0.0
    %1695 = vmatpush1.xpose.msra.mxu0 0.0
    %1696 = vmatprep.subr.mxu0 0.0
    %1697 = vmatpush1.xpose.msra.mxu0 0.0
    %1698 = vmatprep.subr.mxu0 0.0
    %1699 = vmatpush1.xpose.msra.mxu0 0.0
    %1700 = vmatprep.subr.mxu0 0.0
    %1701 = vmatpush1.xpose.msra.mxu0 0.0
    %1702 = vmatprep.subr.mxu0 0.0
    %1703 = vmatpush1.xpose.msra.mxu0 0.0
    %1704 = vmatprep.subr.mxu0 0.0
    %1705 = vmatpush1.xpose.msra.mxu0 0.0
    %1706 = vmatprep.subr.mxu0 0.0
    %1707 = vmatpush1.xpose.msra.mxu0 0.0
    %1708 = vmatprep.subr.mxu0 0.0
    %1709 = vmatpush1.xpose.msra.mxu0 0.0
    %1710 = vmatprep.subr.mxu0 0.0
    %1711 = vmatpush1.xpose.msra.mxu0 0.0
    %1712 = vmatprep.subr.mxu0 0.0
    %1713 = vmatpush1.xpose.msra.mxu0 0.0
    %1714 = vmatprep.subr.mxu0 0.0
    %1715 = vmatpush1.xpose.msra.mxu0 0.0
    %1716 = vmatprep.subr.mxu0 0.0
    %1717 = vmatpush1.xpose.msra.mxu0 0.0
    %1718 = vmatprep.subr.mxu0 0.0
    %1719 = vmatpush1.xpose.msra.mxu0 0.0
    %1720 = vmatprep.subr.mxu0 0.0
    %1721 = vmatpush1.xpose.msra.mxu0 0.0
    %1722 = vmatprep.subr.mxu0 0.0
    %1723 = vmatpush1.xpose.msra.mxu0 0.0
    %1724 = vmatprep.mubr.f32.mxu0 0.0
    %1725 = vmatmul.mubr.f32.gmra.mrb[0].mxu0 %v1656
    %v1726 = vpop.f32.mrb[0].mxu0
    %v1727 = vadd.f32 %v251, %v1726
    %v1728 = vpop.f32.mrb[0].mxu0
    %1729 = vdwg.mxu0
    %v1730 = vsel %vm409, %v1649, -inf
    %1731 = vmax.xlane.f32.xlu0 %v1730
    %v1732 = vpop.xlane.xlu0 %1731
    %v1733 = vsel %vm409, %v1727, -inf
    %1734 = vmax.xlane.f32.xlu0 %v1733
    %v1735 = vpop.xlane.xlu0 %1734
    %v1736 = vsub.f32 %v1649, %v1732
    %v1737 = vsub.f32 %v1727, %v1735
    %v1738 = vmul.f32 %v1736, 1.442695
    %v1739 = vpow.pop %v1738
    %v1740 = vmul.f32 %v1737, 1.442695
    %v1741 = vpow.pop %v1740
    %v1742 = vsel %vm409, %v1739, 0.0
    %1743 = vadd.xlane.f32.xlu0 %v1742
    %v1744 = vpop.xlane.xlu0 %1743
    %v1745 = vsel %vm409, %v1741, 0.0
    %1746 = vadd.xlane.f32.xlu0 %v1745
    %v1747 = vpop.xlane.xlu0 %1746
    %v1748 = vrcp.pop %v1744
    %v1749 = vrcp.pop %v1747
    %v1750 = vmul.f32 %v1739, %v1748
    %v1751 = vmul.f32 %v1741, %v1749
    %1752 = vrot.lane.b32.xlu0 %v1240, 48
    %v1753 = vpop.permute.xlu0 %1752
    %v1756 = vsel %vm409, %v1750, 0
    %1758 = vmatprep.subr.mxu0 0.0
    %1759 = vmatpush1.msra.mxu0 %v1753
    %1760 = vmatprep.subr.mxu0 0.0
    %1761 = vmatpush1.msra.mxu0 0.0
    %1762 = vmatprep.subr.mxu0 0.0
    %1763 = vmatpush1.msra.mxu0 0.0
    %1764 = vmatprep.subr.mxu0 0.0
    %1765 = vmatpush1.msra.mxu0 0.0
    %1766 = vmatprep.subr.mxu0 0.0
    %1767 = vmatpush1.msra.mxu0 0.0
    %1768 = vmatprep.subr.mxu0 0.0
    %1769 = vmatpush1.msra.mxu0 0.0
    %1770 = vmatprep.subr.mxu0 0.0
    %1771 = vmatpush1.msra.mxu0 0.0
    %1772 = vmatprep.subr.mxu0 0.0
    %1773 = vmatpush1.msra.mxu0 0.0
    %1774 = vmatprep.subr.mxu0 0.0
    %1775 = vmatpush1.msra.mxu0 0.0
    %1776 = vmatprep.subr.mxu0 0.0
    %1777 = vmatpush1.msra.mxu0 0.0
    %1778 = vmatprep.subr.mxu0 0.0
    %1779 = vmatpush1.msra.mxu0 0.0
    %1780 = vmatprep.subr.mxu0 0.0
    %1781 = vmatpush1.msra.mxu0 0.0
    %1782 = vmatprep.subr.mxu0 0.0
    %1783 = vmatpush1.msra.mxu0 0.0
    %1784 = vmatprep.subr.mxu0 0.0
    %1785 = vmatpush1.msra.mxu0 0.0
    %1786 = vmatprep.subr.mxu0 0.0
    %1787 = vmatpush1.msra.mxu0 0.0
    %1788 = vmatprep.subr.mxu0 0.0
    %1789 = vmatpush1.msra.mxu0 0.0
    %1790 = vmatprep.subr.mxu0 0.0
    %1791 = vmatpush1.msra.mxu0 0.0
    %1792 = vmatprep.subr.mxu0 0.0
    %1793 = vmatpush1.msra.mxu0 0.0
    %1794 = vmatprep.subr.mxu0 0.0
    %1795 = vmatpush1.msra.mxu0 0.0
    %1796 = vmatprep.subr.mxu0 0.0
    %1797 = vmatpush1.msra.mxu0 0.0
    %1798 = vmatprep.subr.mxu0 0.0
    %1799 = vmatpush1.msra.mxu0 0.0
    %1800 = vmatprep.subr.mxu0 0.0
    %1801 = vmatpush1.msra.mxu0 0.0
    %1802 = vmatprep.subr.mxu0 0.0
    %1803 = vmatpush1.msra.mxu0 0.0
    %1804 = vmatprep.subr.mxu0 0.0
    %1805 = vmatpush1.msra.mxu0 0.0
    %1806 = vmatprep.subr.mxu0 0.0
    %1807 = vmatpush1.msra.mxu0 0.0
    %1808 = vmatprep.subr.mxu0 0.0
    %1809 = vmatpush1.msra.mxu0 0.0
    %1810 = vmatprep.subr.mxu0 0.0
    %1811 = vmatpush1.msra.mxu0 0.0
    %1812 = vmatprep.subr.mxu0 0.0
    %1813 = vmatpush1.msra.mxu0 0.0
    %1814 = vmatprep.subr.mxu0 0.0
    %1815 = vmatpush1.msra.mxu0 0.0
    %1816 = vmatprep.subr.mxu0 0.0
    %1817 = vmatpush1.msra.mxu0 0.0
    %1818 = vmatprep.subr.mxu0 0.0
    %1819 = vmatpush1.msra.mxu0 0.0
    %1820 = vmatprep.subr.mxu0 0.0
    %1821 = vmatpush1.msra.mxu0 0.0
    %1822 = vmatprep.mubr.f32.mxu0 0.0
    %1823 = vmatmul.mubr.f32.gmra.mrb[0].mxu0 %v1756
    %v1824 = vpop.f32.mrb[0].mxu0
    %v1825 = vadd.f32 0.0, %v1824
    %v1826 = vpop.f32.mrb[0].mxu0
    %1827 = vdwg.mxu0
    %1828 = vrot.lane.b32.xlu0 %v1243, 48
    %v1829 = vpop.permute.xlu0 %1828
    %v1832 = vsel %vm409, %v1751, 0
    %1834 = vmatprep.subr.mxu0 0.0
    %1835 = vmatpush1.msra.mxu0 %v1829
    %1836 = vmatprep.subr.mxu0 0.0
    %1837 = vmatpush1.msra.mxu0 0.0
    %1838 = vmatprep.subr.mxu0 0.0
    %1839 = vmatpush1.msra.mxu0 0.0
    %1840 = vmatprep.subr.mxu0 0.0
    %1841 = vmatpush1.msra.mxu0 0.0
    %1842 = vmatprep.subr.mxu0 0.0
    %1843 = vmatpush1.msra.mxu0 0.0
    %1844 = vmatprep.subr.mxu0 0.0
    %1845 = vmatpush1.msra.mxu0 0.0
    %1846 = vmatprep.subr.mxu0 0.0
    %1847 = vmatpush1.msra.mxu0 0.0
    %1848 = vmatprep.subr.mxu0 0.0
    %1849 = vmatpush1.msra.mxu0 0.0
    %1850 = vmatprep.subr.mxu0 0.0
    %1851 = vmatpush1.msra.mxu0 0.0
    %1852 = vmatprep.subr.mxu0 0.0
    %1853 = vmatpush1.msra.mxu0 0.0
    %1854 = vmatprep.subr.mxu0 0.0
    %1855 = vmatpush1.msra.mxu0 0.0
    %1856 = vmatprep.subr.mxu0 0.0
    %1857 = vmatpush1.msra.mxu0 0.0
    %1858 = vmatprep.subr.mxu0 0.0
    %1859 = vmatpush1.msra.mxu0 0.0
    %1860 = vmatprep.subr.mxu0 0.0
    %1861 = vmatpush1.msra.mxu0 0.0
    %1862 = vmatprep.subr.mxu0 0.0
    %1863 = vmatpush1.msra.mxu0 0.0
    %1864 = vmatprep.subr.mxu0 0.0
    %1865 = vmatpush1.msra.mxu0 0.0
    %1866 = vmatprep.subr.mxu0 0.0
    %1867 = vmatpush1.msra.mxu0 0.0
    %1868 = vmatprep.subr.mxu0 0.0
    %1869 = vmatpush1.msra.mxu0 0.0
    %1870 = vmatprep.subr.mxu0 0.0
    %1871 = vmatpush1.msra.mxu0 0.0
    %1872 = vmatprep.subr.mxu0 0.0
    %1873 = vmatpush1.msra.mxu0 0.0
    %1874 = vmatprep.subr.mxu0 0.0
    %1875 = vmatpush1.msra.mxu0 0.0
    %1876 = vmatprep.subr.mxu0 0.0
    %1877 = vmatpush1.msra.mxu0 0.0
    %1878 = vmatprep.subr.mxu0 0.0
    %1879 = vmatpush1.msra.mxu0 0.0
    %1880 = vmatprep.subr.mxu0 0.0
    %1881 = vmatpush1.msra.mxu0 0.0
    %1882 = vmatprep.subr.mxu0 0.0
    %1883 = vmatpush1.msra.mxu0 0.0
    %1884 = vmatprep.subr.mxu0 0.0
    %1885 = vmatpush1.msra.mxu0 0.0
    %1886 = vmatprep.subr.mxu0 0.0
    %1887 = vmatpush1.msra.mxu0 0.0
    %1888 = vmatprep.subr.mxu0 0.0
    %1889 = vmatpush1.msra.mxu0 0.0
    %1890 = vmatprep.subr.mxu0 0.0
    %1891 = vmatpush1.msra.mxu0 0.0
    %1892 = vmatprep.subr.mxu0 0.0
    %1893 = vmatpush1.msra.mxu0 0.0
    %1894 = vmatprep.subr.mxu0 0.0
    %1895 = vmatpush1.msra.mxu0 0.0
    %1896 = vmatprep.subr.mxu0 0.0
    %1897 = vmatpush1.msra.mxu0 0.0
    %1898 = vmatprep.mubr.f32.mxu0 0.0
    %1899 = vmatmul.mubr.f32.gmra.mrb[0].mxu0 %v1832
    %v1900 = vpop.f32.mrb[0].mxu0
    %v1901 = vadd.f32 0.0, %v1900
    %v1902 = vpop.f32.mrb[0].mxu0
    %1903 = vdwg.mxu0
    %1906 = vrot.lane.b32.xlu0 %v1825, 16
    %v1907 = vpop.permute.xlu0 %1906
    %1908 = vrot.lane.b32.xlu0 %v1901, 16
    %v1909 = vpop.permute.xlu0 %1908
    %v1912 = vsel %vm257, %v1495, %v1907
    %v1913 = vsel %vm257, %v1571, %v1909
    %v1914 = vpack.c.bf16 %v1913, %v1912
    %v1919 = vunpack.c.l.b16 %v1147
    %v1920 = vunpack.c.l.b16 %v1148
    %v1921 = vunpack.c.l.b16 %v1149
    %v1922 = vunpack.c.l.b16 %v1150
    %v1923 = vpack.c.b16 %v1920, %v1919
    %v1924 = vpack.c.b16 %v1922, %v1921
    %v1928 = vsel %vm161, %v1914, 0
    %1930 = vmatprep.subr.bf16.mxu0 0
    %1931 = vmatpush1.bf16.msra.mxu0 %v1923
    %1932 = vmatprep.subr.bf16.mxu0 0
    %1933 = vmatpush1.bf16.msra.mxu0 %v1924
    %1934 = vmatprep.subr.bf16.mxu0 0
    %1935 = vmatpush1.bf16.msra.mxu0 0
    %1936 = vmatprep.subr.bf16.mxu0 0
    %1937 = vmatpush1.bf16.msra.mxu0 0
    %1938 = vmatprep.subr.bf16.mxu0 0
    %1939 = vmatpush1.bf16.msra.mxu0 0
    %1940 = vmatprep.subr.bf16.mxu0 0
    %1941 = vmatpush1.bf16.msra.mxu0 0
    %1942 = vmatprep.subr.bf16.mxu0 0
    %1943 = vmatpush1.bf16.msra.mxu0 0
    %1944 = vmatprep.subr.bf16.mxu0 0
    %1945 = vmatpush1.bf16.msra.mxu0 0
    %1946 = vmatprep.subr.bf16.mxu0 0
    %1947 = vmatpush1.bf16.msra.mxu0 0
    %1948 = vmatprep.subr.bf16.mxu0 0
    %1949 = vmatpush1.bf16.msra.mxu0 0
    %1950 = vmatprep.subr.bf16.mxu0 0
    %1951 = vmatpush1.bf16.msra.mxu0 0
    %1952 = vmatprep.subr.bf16.mxu0 0
    %1953 = vmatpush1.bf16.msra.mxu0 0
    %1954 = vmatprep.subr.bf16.mxu0 0
    %1955 = vmatpush1.bf16.msra.mxu0 0
    %1956 = vmatprep.subr.bf16.mxu0 0
    %1957 = vmatpush1.bf16.msra.mxu0 0
    %1958 = vmatprep.subr.bf16.mxu0 0
    %1959 = vmatpush1.bf16.msra.mxu0 0
    %1960 = vmatprep.subr.bf16.mxu0 0
    %1961 = vmatpush1.bf16.msra.mxu0 0
    %1962 = vmatprep.mubr.bf16.mxu0 0
    %1963 = vmatmul.mubr.bf16.gmra.mrb[0].mxu0 %v1928
    %v1964 = vpop.f32.mrb[0].mxu0
    %v1965 = vadd.f32 0.0, %v1964
    %v1966 = vpop.f32.mrb[0].mxu0
    %v1967 = vpop.f32.mrb[0].mxu0
    %v1968 = vadd.f32 0.0, %v1967
    %v1969 = vpop.f32.mrb[0].mxu0
    %1970 = vdwg.mxu0
    %v1971 = vadd.f32 %v1135, %v1965
    %v1972 = vadd.f32 %v1136, %v1968
    %v1973 = vmul.f32 %v1971, %v1971
    %v1974 = vmul.f32 %v1972, %v1972
    %v1975 = vsel %vm161, %v1973, 0.0
    %1976 = vadd.xlane.f32.xlu0 %v1975
    %v1977 = vpop.xlane.xlu0 %1976
    %v1978 = vsel %vm161, %v1974, 0.0
    %1979 = vadd.xlane.f32.xlu0 %v1978
    %v1980 = vpop.xlane.xlu0 %1979
    %v1981 = vmul.f32 %v1977, %v168
    %v1982 = vmul.f32 %v1980, %v168
    %v1983 = vadd.f32 %v1981, 1e-06
    %v1984 = vadd.f32 %v1982, 1e-06
    %v1985 = vrsqrt.pop %v1983
    %v1986 = vrsqrt.pop %v1984
    %v1987 = vmul.f32 %v1971, %v1985
    %v1988 = vmul.f32 %v1972, %v1986
    %v1990 = vlaneseq
    %v1991 = vshrl.u32 %v1990, 7
    %v1992 = vsub.s32 0, %v1991
    %v1993 = vrot.slane %v1140, %v1992
    %v1995 = vmul.f32 %v1987, %v1993
    %v1996 = vmul.f32 %v1988, %v1993
    %v1997 = vpack.c.bf16 %v1996, %v1995
    %v2002 = vunpack.c.l.b16 %v1152
    %v2003 = vunpack.c.l.b16 %v1153
    %v2004 = vunpack.c.l.b16 %v1154
    %v2005 = vunpack.c.l.b16 %v1155
    %v2006 = vpack.c.b16 %v2003, %v2002
    %v2007 = vpack.c.b16 %v2005, %v2004
    %v2011 = vsel %vm161, %v1997, 0
    %2013 = vmatprep.subr.bf16.mxu0 0
    %2014 = vmatpush1.bf16.msra.mxu0 %v2006
    %2015 = vmatprep.subr.bf16.mxu0 0
    %2016 = vmatpush1.bf16.msra.mxu0 %v2007
    %2017 = vmatprep.subr.bf16.mxu0 0
    %2018 = vmatpush1.bf16.msra.mxu0 0
    %2019 = vmatprep.subr.bf16.mxu0 0
    %2020 = vmatpush1.bf16.msra.mxu0 0
    %2021 = vmatprep.subr.bf16.mxu0 0
    %2022 = vmatpush1.bf16.msra.mxu0 0
    %2023 = vmatprep.subr.bf16.mxu0 0
    %2024 = vmatpush1.bf16.msra.mxu0 0
    %2025 = vmatprep.subr.bf16.mxu0 0
    %2026 = vmatpush1.bf16.msra.mxu0 0
    %2027 = vmatprep.subr.bf16.mxu0 0
    %2028 = vmatpush1.bf16.msra.mxu0 0
    %2029 = vmatprep.subr.bf16.mxu0 0
    %2030 = vmatpush1.bf16.msra.mxu0 0
    %2031 = vmatprep.subr.bf16.mxu0 0
    %2032 = vmatpush1.bf16.msra.mxu0 0
    %2033 = vmatprep.subr.bf16.mxu0 0
    %2034 = vmatpush1.bf16.msra.mxu0 0
    %2035 = vmatprep.subr.bf16.mxu0 0
    %2036 = vmatpush1.bf16.msra.mxu0 0
    %2037 = vmatprep.subr.bf16.mxu0 0
    %2038 = vmatpush1.bf16.msra.mxu0 0
    %2039 = vmatprep.subr.bf16.mxu0 0
    %2040 = vmatpush1.bf16.msra.mxu0 0
    %2041 = vmatprep.subr.bf16.mxu0 0
    %2042 = vmatpush1.bf16.msra.mxu0 0
    %2043 = vmatprep.subr.bf16.mxu0 0
    %2044 = vmatpush1.bf16.msra.mxu0 0
    %2045 = vmatprep.mubr.bf16.mxu0 0
    %2046 = vmatmul.mubr.bf16.gmra.mrb[0].mxu0 %v2011
    %v2047 = vpop.f32.mrb[0].mxu0
    %v2048 = vadd.f32 0.0, %v2047
    %v2049 = vpop.f32.mrb[0].mxu0
    %v2050 = vpop.f32.mrb[0].mxu0
    %v2051 = vadd.f32 0.0, %v2050
    %v2052 = vpop.f32.mrb[0].mxu0
    %2053 = vdwg.mxu0
    %v2054 = vmax.f32 %v2048, 0.0
    %v2055 = vmax.f32 %v2051, 0.0
    %v2056 = vpack.c.bf16 %v2055, %v2054
    %v2065 = vunpack.c.l.b16 %v1157
    %v2066 = vunpack.c.l.b16 %v1158
    %v2067 = vunpack.c.l.b16 %v1159
    %v2068 = vunpack.c.l.b16 %v1160
    %v2069 = vunpack.c.l.b16 %v1161
    %v2070 = vunpack.c.l.b16 %v1162
    %v2071 = vunpack.c.l.b16 %v1163
    %v2072 = vunpack.c.l.b16 %v1164
    %v2073 = vpack.c.b16 %v2066, %v2065
    %v2074 = vpack.c.b16 %v2068, %v2067
    %v2075 = vpack.c.b16 %v2070, %v2069
    %v2076 = vpack.c.b16 %v2072, %v2071
    %v2082 = vsel %vm86, %v2056, 0
    %2084 = vmatprep.subr.bf16.mxu0 0
    %2085 = vmatpush1.bf16.msra.mxu0 %v2073
    %2086 = vmatprep.subr.bf16.mxu0 0
    %2087 = vmatpush1.bf16.msra.mxu0 %v2074
    %2088 = vmatprep.subr.bf16.mxu0 0
    %2089 = vmatpush1.bf16.msra.mxu0 %v2075
    %2090 = vmatprep.subr.bf16.mxu0 0
    %2091 = vmatpush1.bf16.msra.mxu0 %v2076
    %2092 = vmatprep.subr.bf16.mxu0 0
    %2093 = vmatpush1.bf16.msra.mxu0 0
    %2094 = vmatprep.subr.bf16.mxu0 0
    %2095 = vmatpush1.bf16.msra.mxu0 0
    %2096 = vmatprep.subr.bf16.mxu0 0
    %2097 = vmatpush1.bf16.msra.mxu0 0
    %2098 = vmatprep.subr.bf16.mxu0 0
    %2099 = vmatpush1.bf16.msra.mxu0 0
    %2100 = vmatprep.subr.bf16.mxu0 0
    %2101 = vmatpush1.bf16.msra.mxu0 0
    %2102 = vmatprep.subr.bf16.mxu0 0
    %2103 = vmatpush1.bf16.msra.mxu0 0
    %2104 = vmatprep.subr.bf16.mxu0 0
    %2105 = vmatpush1.bf16.msra.mxu0 0
    %2106 = vmatprep.subr.bf16.mxu0 0
    %2107 = vmatpush1.bf16.msra.mxu0 0
    %2108 = vmatprep.subr.bf16.mxu0 0
    %2109 = vmatpush1.bf16.msra.mxu0 0
    %2110 = vmatprep.subr.bf16.mxu0 0
    %2111 = vmatpush1.bf16.msra.mxu0 0
    %2112 = vmatprep.subr.bf16.mxu0 0
    %2113 = vmatpush1.bf16.msra.mxu0 0
    %2114 = vmatprep.subr.bf16.mxu0 0
    %2115 = vmatpush1.bf16.msra.mxu0 0
    %2116 = vmatprep.mubr.bf16.mxu0 0
    %2117 = vmatmul.mubr.bf16.gmra.mrb[0].mxu0 %v2082
    %v2118 = vpop.f32.mrb[0].mxu0
    %v2119 = vadd.f32 0.0, %v2118
    %v2120 = vpop.f32.mrb[0].mxu0
    %v2121 = vpop.f32.mrb[0].mxu0
    %v2122 = vadd.f32 0.0, %v2121
    %v2123 = vpop.f32.mrb[0].mxu0
    %2124 = vdwg.mxu0
    %v2125 = vadd.f32 %v1971, %v2119
    %v2126 = vadd.f32 %v1972, %v2122
    %v2127 = vld [vmem:[%s9] sm:$0x1]
    %v2128 = vmul.f32 %v2125, %v2125
    %v2129 = vmul.f32 %v2126, %v2126
    %v2130 = vsel %vm161, %v2128, 0.0
    %2131 = vadd.xlane.f32.xlu0 %v2130
    %v2132 = vpop.xlane.xlu0 %2131
    %v2133 = vsel %vm161, %v2129, 0.0
    %2134 = vadd.xlane.f32.xlu0 %v2133
    %v2135 = vpop.xlane.xlu0 %2134
    %v2136 = vmul.f32 %v2132, %v168
    %v2137 = vmul.f32 %v2135, %v168
    %v2138 = vadd.f32 %v2136, 1e-06
    %v2139 = vadd.f32 %v2137, 1e-06
    %v2140 = vrsqrt.pop %v2138
    %v2141 = vrsqrt.pop %v2139
    %v2142 = vmul.f32 %v2125, %v2140
    %v2143 = vmul.f32 %v2126, %v2141
    %v2145 = vlaneseq
    %v2146 = vshrl.u32 %v2145, 7
    %v2147 = vsub.s32 0, %v2146
    %v2148 = vrot.slane %v2127, %v2147
    %v2150 = vmul.f32 %v2142, %v2148
    %v2151 = vmul.f32 %v2143, %v2148
    %2152 = vst.msk [vmem:[#allocation2] sm:$0xff] %vm161, %v2150
    %2153 = vst.msk [vmem:[#allocation2 + $0x8] sm:$0xff] %vm161, %v2151
    // Predicated region
    $region42: #{language_tokenizer_forward.1} parent=1 // pred_check
      _
    $region43: #{language_tokenizer_forward.1} parent=1 // pred_check_branch
      %2155 = sbr.rel (0) target = $region45
    $region44: #{language_tokenizer_forward.1} parent=1 // pred_region
      %s2157 = ssub.s32 256, 256
      %2158 = vsyncadd [#allocation3], %s2157
      %s2159 = sshll.u32 [#allocation2], 4
      %s2160 = int_to_ptr.vmem [resolvable:$true] %s2159
      %2165 = dma.vmem_to_hbm [thread:$0]  %s2160, 256, %s10, [#allocation3], 128, 128, 8
    $region45: #{language_tokenizer_forward.1} parent=1 // pred_fallthru
      _
    // Predicated region
    $region46: #{language_tokenizer_forward.1} parent=1 // pred_check
      _
    $region47: #{language_tokenizer_forward.1} parent=1 // pred_check_branch
      %2167 = sbr.rel (0) target = $region49
    $region48: #{language_tokenizer_forward.1} parent=1 // pred_region
      %2168 = dma.done [#allocation3], 256
    $region49: #{language_tokenizer_forward.1} parent=1 // pred_fallthru
      _
    %2169 = vsyncpa [#allocation3], 1

</llo_original>
